<compile_context>
chip_gen: v6e
topology: v6e:2x2x1
jax: 0.10.0
libtpu: 0.0.40
codegen_flags: <defaults>
</compile_context>

<pallas_src>
import functools
import math

import jax
import jax.numpy as jnp
from jax.experimental import pallas as pl
from jax.experimental.pallas import tpu as pltpu


# ----------------------------- config (small, synthetic) --------------------
BATCH = 2
SEQ_Q = 128          # query sequence length
SEQ_K = 128          # encoder (key/value) sequence length
HIDDEN = 256         # hidden_size
NUM_HEADS = 2
HEAD_DIM = HIDDEN // NUM_HEADS      # 128 -> lane-tile aligned head slices
LORA_R = 16
LORA_ALPHA = 32
LORA_SCALING = LORA_ALPHA / LORA_R  # 2.0


# ----------------------------- kernel ---------------------------------------
def lora_cross_attn_kernel(x_ref, enc_ref, mask_ref,
                           wq_ref, bq_ref, wkv_ref, bkv_ref,
                           out_ref, *, num_heads, head_dim, hidden):
    # x_ref:    (Sq, H)   hidden_states for this batch element (bf16)
    # enc_ref:  (Sk, H)   encoder_hidden_states for this batch element (bf16)
    # mask_ref: (1, Sk)   additive attention mask (f32), broadcast over Sq here
    # wq_ref:   (H, H)    query weight with 1/sqrt(dh) pre-folded (bf16)
    # bq_ref:   (1, H)    query bias with 1/sqrt(dh) pre-folded (f32)
    # wkv_ref:  (H, 2H)   [Wk | Wv_eff] fused key/value weight (bf16)
    # bkv_ref:  (1, 2H)   [bk | 0]      fused key/value bias (f32)
    x = x_ref[...]
    e = enc_ref[...]
    mask = mask_ref[...]                      # (1, Sk), broadcasts over query rows

    # Fused projections on the MXU, f32 accumulation.
    q = jnp.dot(x, wq_ref[...], preferred_element_type=jnp.float32) + bq_ref[...]
    kv = jnp.dot(e, wkv_ref[...], preferred_element_type=jnp.float32) + bkv_ref[...]
    k = kv[:, :hidden]
    v = kv[:, hidden:]

    # bf16 operands for the attention matmuls (accumulate in f32).
    q_b = q.astype(jnp.bfloat16)
    k_b = k.astype(jnp.bfloat16)
    v_b = v.astype(jnp.bfloat16)

    for h in range(num_heads):                       # static unrolled head loop
        lo, hi = h * head_dim, (h + 1) * head_dim    # lane-tile aligned slices

        # scores = qh @ kh^T (scaling already folded into Wq), plus mask.
        s = jax.lax.dot_general(
            q_b[:, lo:hi], k_b[:, lo:hi], (((1,), (1,)), ((), ())),
            preferred_element_type=jnp.float32)      # (Sq, Sk)
        s = s + mask

        # Numerically stable softmax along keys (f32 elementwise).
        m = jnp.max(s, axis=-1, keepdims=True)
        p = jnp.exp(s - m)
        denom = jnp.sum(p, axis=-1, keepdims=True)
        probs = p * pl.reciprocal(denom, approx=True)

        ctx = jnp.dot(probs.astype(jnp.bfloat16), v_b[:, lo:hi],
                      preferred_element_type=jnp.float32)          # (Sq, dh)

        # Direct lane-dense, 128-aligned store of this head's slice.
        out_ref[:, lo:hi] = ctx.astype(out_ref.dtype)


# ----------------------------- wrapper ---------------------------------------
def lora_self_attention(hidden_states, encoder_hidden_states, attention_mask,
                        wq, bq, wk, bk, wa, wb,
                        *, num_heads=NUM_HEADS, lora_scaling=LORA_SCALING):
    """Cross-attention LORASelfAttention forward.

    hidden_states:         (B, Sq, H) f32
    encoder_hidden_states: (B, Sk, H) f32
    attention_mask:        (B, Sk) f32 additive mask (0 = keep, -1e4 = drop),
                           identical across query positions.
    wq, wk: (H, H) input-major (x @ W == torch Linear) ; bq, bk: (H,)
    wa: (H, r) ; wb: (r, H)
    returns context_layer: (B, Sq, H) f32
    """
    b, sq, h = hidden_states.shape
    sk = encoder_hidden_states.shape[1]
    head_dim = h // num_heads
    inv_sqrt_d = 1.0 / math.sqrt(head_dim)
    hp = jax.lax.Precision.HIGHEST

    # ---- one-time weight prep (would live at param-load time in a real model) ----
    # Fold 1/sqrt(head_dim) into the query projection.
    wq_s = (wq * inv_sqrt_d).astype(jnp.bfloat16)
    bq_s = (bq * inv_sqrt_d).reshape(1, h).astype(jnp.float32)
    # Fold LoRA into a dense value weight and fuse with the key weight.
    wv_eff = jnp.dot(wa, wb, precision=hp) * lora_scaling            # (H, H)
    wkv = jnp.concatenate([wk, wv_eff], axis=1).astype(jnp.bfloat16)  # (H, 2H)
    bkv = jnp.concatenate([bk, jnp.zeros((h,), bk.dtype)]
                          ).reshape(1, 2 * h).astype(jnp.float32)

    # Activations in bf16 (halves DMA bytes, native MXU path); mask stays f32.
    x_b = hidden_states.astype(jnp.bfloat16)
    e_b = encoder_hidden_states.astype(jnp.bfloat16)
    mask3 = attention_mask.reshape(b, 1, sk).astype(jnp.float32)

    kernel = functools.partial(
        lora_cross_attn_kernel,
        num_heads=num_heads, head_dim=head_dim, hidden=h)

    flops = 2 * b * (sq * h * h            # Q projection
                     + sk * h * 2 * h      # fused K/V projection
                     + sq * sk * h         # QK^T over all heads
                     + sq * sk * h)        # PV over all heads
    transcendentals = b * num_heads * sq * sk
    bytes_accessed = (x_b.size * 2 + e_b.size * 2 + mask3.size * 4
                      + wq_s.size * 2 + wkv.size * 2
                      + bq_s.size * 4 + bkv.size * 4
                      + b * sq * h * 4)

    const = lambda rows, cols: pl.BlockSpec((rows, cols), lambda i: (0, 0))

    out = pl.pallas_call(
        kernel,
        out_shape=jax.ShapeDtypeStruct((b, sq, h), jnp.float32),
        grid_spec=pltpu.PrefetchScalarGridSpec(
            num_scalar_prefetch=0,
            grid=(b,),
            in_specs=[
                pl.BlockSpec((None, sq, h), lambda i: (i, 0, 0)),    # hidden_states
                pl.BlockSpec((None, sk, h), lambda i: (i, 0, 0)),    # encoder_hidden_states
                pl.BlockSpec((None, 1, sk), lambda i: (i, 0, 0)),    # additive mask (1, Sk)
                const(h, h), const(1, h),                            # Wq (scaled), bq (scaled)
                const(h, 2 * h), const(1, 2 * h),                    # [Wk|Wv_eff], [bk|0]
            ],
            out_specs=pl.BlockSpec((None, sq, h), lambda i: (i, 0, 0)),
        ),
        compiler_params=pltpu.CompilerParams(
            dimension_semantics=("parallel",)),
        cost_estimate=pl.CostEstimate(flops=flops,
                                      transcendentals=transcendentals,
                                      bytes_accessed=bytes_accessed),
    )(x_b, e_b, mask3, wq_s, bq_s, wkv, bkv)

    return out


# ----------------------------- reference (pure JAX, f32) ----------------------
def lora_self_attention_ref(hidden_states, encoder_hidden_states, attention_mask,
                            wq, bq, wk, bk, wa, wb,
                            *, num_heads=NUM_HEADS, lora_scaling=LORA_SCALING):
    hp = jax.lax.Precision.HIGHEST
    b, sq, h = hidden_states.shape
    dh = h // num_heads

    q = jnp.dot(hidden_states, wq, precision=hp) + bq
    k = jnp.dot(encoder_hidden_states, wk, precision=hp) + bk
    v = jnp.dot(jnp.dot(encoder_hidden_states, wa, precision=hp), wb,
                precision=hp) * lora_scaling

    def split(t):
        bb, s, _ = t.shape
        return t.reshape(bb, s, num_heads, dh).transpose(0, 2, 1, 3)

    qh, kh, vh = split(q), split(k), split(v)
    s = jnp.einsum('bhqd,bhkd->bhqk', qh, kh, precision=hp) / math.sqrt(dh)
    s = s + attention_mask[:, None, None, :]
    p = jax.nn.softmax(s, axis=-1)
    ctx = jnp.einsum('bhqk,bhkd->bhqd', p, vh, precision=hp)
    return ctx.transpose(0, 2, 1, 3).reshape(b, sq, h)


# ----------------------------- main -------------------------------------------
if __name__ == "__main__":
    key = jax.random.PRNGKey(0)
    ks = jax.random.split(key, 8)

    hidden_states = 0.5 * jax.random.normal(ks[0], (BATCH, SEQ_Q, HIDDEN), jnp.float32)
    encoder_hidden_states = 0.5 * jax.random.normal(ks[1], (BATCH, SEQ_K, HIDDEN), jnp.float32)

    wq = 0.05 * jax.random.normal(ks[2], (HIDDEN, HIDDEN), jnp.float32)
    bq = 0.05 * jax.random.normal(ks[3], (HIDDEN,), jnp.float32)
    wk = 0.05 * jax.random.normal(ks[4], (HIDDEN, HIDDEN), jnp.float32)
    bk = 0.05 * jax.random.normal(ks[5], (HIDDEN,), jnp.float32)
    wa = 0.05 * jax.random.normal(ks[6], (HIDDEN, LORA_R), jnp.float32)
    wb = 0.05 * jax.random.normal(ks[7], (LORA_R, HIDDEN), jnp.float32)

    # Additive encoder attention mask (BERT-style, identical across query rows):
    # batch 0 fully valid, batch 1 has its last 32 encoder positions masked out.
    valid = jnp.ones((BATCH, SEQ_K), jnp.float32).at[1, SEQ_K - 32:].set(0.0)
    attention_mask = (1.0 - valid) * -1e4                              # (B, Sk)

    out = lora_self_attention(hidden_states, encoder_hidden_states, attention_mask,
                              wq, bq, wk, bk, wa, wb)
    out = jax.block_until_ready(out)

    ref = lora_self_attention_ref(hidden_states, encoder_hidden_states, attention_mask,
                                  wq, bq, wk, bk, wa, wb)

    assert out.shape == (BATCH, SEQ_Q, HIDDEN)
    # Tolerance relaxed vs the pure-f32 reference because matmul operands are bf16
    # (per the perf review); observed error is well inside this bound.
    assert jnp.allclose(out, ref, atol=2e-2, rtol=2e-2), (
        f"mismatch vs reference, max abs err = {jnp.max(jnp.abs(out - ref))}")

    print("KERNEL_OK")
</pallas_src>

<mosaic_0001>
module attributes {stable_mosaic.version = 11 : i64} {
  func.func @lora_cross_attn_kernel(%arg0: i32, %arg1: memref<1x128x256xbf16, #tpu.memory_space<vmem>>, %arg2: memref<1x128x256xbf16, #tpu.memory_space<vmem>>, %arg3: memref<1x1x128xf32, #tpu.memory_space<vmem>>, %arg4: memref<256x256xbf16, #tpu.memory_space<vmem>>, %arg5: memref<1x256xf32, #tpu.memory_space<vmem>>, %arg6: memref<256x512xbf16, #tpu.memory_space<vmem>>, %arg7: memref<1x512xf32, #tpu.memory_space<vmem>>, %arg8: memref<1x128x256xf32, #tpu.memory_space<vmem>>) attributes {dimension_semantics = [#tpu.dimension_semantics<parallel>], iteration_bounds = array<i64: 2>, scalar_prefetch = 0 : i64, scratch_operands = 0 : i64, tpu.core_type = #tpu.core_type<tc>, window_params = [{transform_indices = @transform_0, window_bounds = array<i64: 1, 128, 256>}, {transform_indices = @transform_1, window_bounds = array<i64: 1, 128, 256>}, {transform_indices = @transform_2, window_bounds = array<i64: 1, 1, 128>}, {pipeline_mode = #tpu.pipeline_mode<synchronous>, transform_indices = @transform_3, window_bounds = array<i64: 256, 256>}, {pipeline_mode = #tpu.pipeline_mode<synchronous>, transform_indices = @transform_4, window_bounds = array<i64: 1, 256>}, {pipeline_mode = #tpu.pipeline_mode<synchronous>, transform_indices = @transform_5, window_bounds = array<i64: 256, 512>}, {pipeline_mode = #tpu.pipeline_mode<synchronous>, transform_indices = @transform_6, window_bounds = array<i64: 1, 512>}, {transform_indices = @transform_7, window_bounds = array<i64: 1, 128, 256>}]} {
    %c0 = arith.constant 0 : index
    %c0_0 = arith.constant 0 : index
    %c0_1 = arith.constant 0 : index
    %0 = vector.load %arg1[%c0, %c0_0, %c0_1] : memref<1x128x256xbf16, #tpu.memory_space<vmem>>, vector<1x128x256xbf16>
    %1 = vector.shape_cast %0 : vector<1x128x256xbf16> to vector<128x256xbf16>
    %c0_2 = arith.constant 0 : index
    %c0_3 = arith.constant 0 : index
    %c0_4 = arith.constant 0 : index
    %2 = vector.load %arg2[%c0_2, %c0_3, %c0_4] : memref<1x128x256xbf16, #tpu.memory_space<vmem>>, vector<1x128x256xbf16>
    %3 = vector.shape_cast %2 : vector<1x128x256xbf16> to vector<128x256xbf16>
    %c0_5 = arith.constant 0 : index
    %c0_6 = arith.constant 0 : index
    %c0_7 = arith.constant 0 : index
    %4 = vector.load %arg3[%c0_5, %c0_6, %c0_7] : memref<1x1x128xf32, #tpu.memory_space<vmem>>, vector<1x1x128xf32>
    %5 = vector.shape_cast %4 : vector<1x1x128xf32> to vector<1x128xf32>
    %c0_8 = arith.constant 0 : index
    %c0_9 = arith.constant 0 : index
    %6 = vector.load %arg4[%c0_8, %c0_9] : memref<256x256xbf16, #tpu.memory_space<vmem>>, vector<256x256xbf16>
    %cst = arith.constant dense<0.000000e+00> : vector<128x256xf32>
    %7 = tpu.matmul %1, %6, %cst {dimension_numbers = #tpu.dot_dimension_numbers<[1], [0], [0], [1], [0, 0, 1, 1], [], []>} : vector<128x256xbf16>, vector<256x256xbf16>, vector<128x256xf32> -> vector<128x256xf32>
    %c0_10 = arith.constant 0 : index
    %c0_11 = arith.constant 0 : index
    %8 = vector.load %arg5[%c0_10, %c0_11] : memref<1x256xf32, #tpu.memory_space<vmem>>, vector<1x256xf32>
    %9 = vector.broadcast %8 : vector<1x256xf32> to vector<128x256xf32>
    %10 = arith.addf %7, %9 : vector<128x256xf32>
    %c0_12 = arith.constant 0 : index
    %c0_13 = arith.constant 0 : index
    %11 = vector.load %arg6[%c0_12, %c0_13] : memref<256x512xbf16, #tpu.memory_space<vmem>>, vector<256x512xbf16>
    %cst_14 = arith.constant dense<0.000000e+00> : vector<128x512xf32>
    %12 = tpu.matmul %3, %11, %cst_14 {dimension_numbers = #tpu.dot_dimension_numbers<[1], [0], [0], [1], [0, 0, 1, 1], [], []>} : vector<128x256xbf16>, vector<256x512xbf16>, vector<128x512xf32> -> vector<128x512xf32>
    %c0_15 = arith.constant 0 : index
    %c0_16 = arith.constant 0 : index
    %13 = vector.load %arg7[%c0_15, %c0_16] : memref<1x512xf32, #tpu.memory_space<vmem>>, vector<1x512xf32>
    %14 = vector.broadcast %13 : vector<1x512xf32> to vector<128x512xf32>
    %15 = arith.addf %12, %14 : vector<128x512xf32>
    %16 = vector.extract_strided_slice %15 {offsets = [0, 0], sizes = [128, 256], strides = [1, 1]} : vector<128x512xf32> to vector<128x256xf32>
    %17 = vector.extract_strided_slice %15 {offsets = [0, 256], sizes = [128, 256], strides = [1, 1]} : vector<128x512xf32> to vector<128x256xf32>
    %18 = arith.truncf %10 : vector<128x256xf32> to vector<128x256xbf16>
    %19 = arith.truncf %16 : vector<128x256xf32> to vector<128x256xbf16>
    %20 = arith.truncf %17 : vector<128x256xf32> to vector<128x256xbf16>
    %21 = vector.extract_strided_slice %18 {offsets = [0, 0], sizes = [128, 128], strides = [1, 1]} : vector<128x256xbf16> to vector<128x128xbf16>
    %22 = vector.extract_strided_slice %19 {offsets = [0, 0], sizes = [128, 128], strides = [1, 1]} : vector<128x256xbf16> to vector<128x128xbf16>
    %cst_17 = arith.constant dense<0.000000e+00> : vector<128x128xf32>
    %23 = tpu.matmul %21, %22, %cst_17 {dimension_numbers = #tpu.dot_dimension_numbers<[1], [1], [0], [0], [0, 0, 1, 0], [], []>} : vector<128x128xbf16>, vector<128x128xbf16>, vector<128x128xf32> -> vector<128x128xf32>
    %24 = vector.broadcast %5 : vector<1x128xf32> to vector<128x128xf32>
    %25 = arith.addf %23, %24 : vector<128x128xf32>
    %cst_18 = arith.constant dense<0xFF800000> : vector<128xf32>
    %26 = vector.multi_reduction <maximumf>, %25, %cst_18 [1] : vector<128x128xf32> to vector<128xf32>
    %27 = vector.shape_cast %26 : vector<128xf32> to vector<128x1xf32>
    %28 = vector.broadcast %27 : vector<128x1xf32> to vector<128x128xf32>
    %29 = arith.subf %25, %28 : vector<128x128xf32>
    %30 = math.exp %29 : vector<128x128xf32>
    %cst_19 = arith.constant dense<0.000000e+00> : vector<128xf32>
    %31 = vector.multi_reduction <add>, %30, %cst_19 [1] : vector<128x128xf32> to vector<128xf32>
    %32 = vector.shape_cast %31 : vector<128xf32> to vector<128x1xf32>
    %33 = tpu.reciprocal %32 {approx = true} : vector<128x1xf32> -> vector<128x1xf32>
    %34 = vector.broadcast %33 : vector<128x1xf32> to vector<128x128xf32>
    %35 = arith.mulf %30, %34 : vector<128x128xf32>
    %36 = arith.truncf %35 : vector<128x128xf32> to vector<128x128xbf16>
    %37 = vector.extract_strided_slice %20 {offsets = [0, 0], sizes = [128, 128], strides = [1, 1]} : vector<128x256xbf16> to vector<128x128xbf16>
    %cst_20 = arith.constant dense<0.000000e+00> : vector<128x128xf32>
    %38 = tpu.matmul %36, %37, %cst_20 {dimension_numbers = #tpu.dot_dimension_numbers<[1], [0], [0], [1], [0, 0, 1, 1], [], []>} : vector<128x128xbf16>, vector<128x128xbf16>, vector<128x128xf32> -> vector<128x128xf32>
    %c0_21 = arith.constant 0 : index
    %c0_22 = arith.constant 0 : index
    %c0_23 = arith.constant 0 : index
    %39 = vector.load %arg8[%c0_21, %c0_22, %c0_23] : memref<1x128x256xf32, #tpu.memory_space<vmem>>, vector<1x128x128xf32>
    %40 = vector.shape_cast %39 : vector<1x128x128xf32> to vector<128x128xf32>
    %41 = vector.shape_cast %38 : vector<128x128xf32> to vector<1x128x128xf32>
    tpu.vector_store %arg8[%c0_21, %c0_22, %c0_23], %41 {strides = array<i32>} : memref<1x128x256xf32, #tpu.memory_space<vmem>>, vector<1x128x128xf32>,
    %42 = vector.extract_strided_slice %18 {offsets = [0, 128], sizes = [128, 128], strides = [1, 1]} : vector<128x256xbf16> to vector<128x128xbf16>
    %43 = vector.extract_strided_slice %19 {offsets = [0, 128], sizes = [128, 128], strides = [1, 1]} : vector<128x256xbf16> to vector<128x128xbf16>
    %cst_24 = arith.constant dense<0.000000e+00> : vector<128x128xf32>
    %44 = tpu.matmul %42, %43, %cst_24 {dimension_numbers = #tpu.dot_dimension_numbers<[1], [1], [0], [0], [0, 0, 1, 0], [], []>} : vector<128x128xbf16>, vector<128x128xbf16>, vector<128x128xf32> -> vector<128x128xf32>
    %45 = vector.broadcast %5 : vector<1x128xf32> to vector<128x128xf32>
    %46 = arith.addf %44, %45 : vector<128x128xf32>
    %cst_25 = arith.constant dense<0xFF800000> : vector<128xf32>
    %47 = vector.multi_reduction <maximumf>, %46, %cst_25 [1] : vector<128x128xf32> to vector<128xf32>
    %48 = vector.shape_cast %47 : vector<128xf32> to vector<128x1xf32>
    %49 = vector.broadcast %48 : vector<128x1xf32> to vector<128x128xf32>
    %50 = arith.subf %46, %49 : vector<128x128xf32>
    %51 = math.exp %50 : vector<128x128xf32>
    %cst_26 = arith.constant dense<0.000000e+00> : vector<128xf32>
    %52 = vector.multi_reduction <add>, %51, %cst_26 [1] : vector<128x128xf32> to vector<128xf32>
    %53 = vector.shape_cast %52 : vector<128xf32> to vector<128x1xf32>
    %54 = tpu.reciprocal %53 {approx = true} : vector<128x1xf32> -> vector<128x1xf32>
    %55 = vector.broadcast %54 : vector<128x1xf32> to vector<128x128xf32>
    %56 = arith.mulf %51, %55 : vector<128x128xf32>
    %57 = arith.truncf %56 : vector<128x128xf32> to vector<128x128xbf16>
    %58 = vector.extract_strided_slice %20 {offsets = [0, 128], sizes = [128, 128], strides = [1, 1]} : vector<128x256xbf16> to vector<128x128xbf16>
    %cst_27 = arith.constant dense<0.000000e+00> : vector<128x128xf32>
    %59 = tpu.matmul %57, %58, %cst_27 {dimension_numbers = #tpu.dot_dimension_numbers<[1], [0], [0], [1], [0, 0, 1, 1], [], []>} : vector<128x128xbf16>, vector<128x128xbf16>, vector<128x128xf32> -> vector<128x128xf32>
    %c0_28 = arith.constant 0 : index
    %c0_29 = arith.constant 0 : index
    %c128 = arith.constant 128 : index
    %60 = vector.load %arg8[%c0_28, %c0_29, %c128] : memref<1x128x256xf32, #tpu.memory_space<vmem>>, vector<1x128x128xf32>
    %61 = vector.shape_cast %60 : vector<1x128x128xf32> to vector<128x128xf32>
    %62 = vector.shape_cast %59 : vector<128x128xf32> to vector<1x128x128xf32>
    tpu.vector_store %arg8[%c0_28, %c0_29, %c128], %62 {strides = array<i32>} : memref<1x128x256xf32, #tpu.memory_space<vmem>>, vector<1x128x128xf32>,
    return
  }
  func.func @transform_0(%arg0: i32) -> (i32, i32, i32) {
    %c0_i32 = arith.constant 0 : i32
    %c0_i32_0 = arith.constant 0 : i32
    %c0_i32_1 = arith.constant 0 : i32
    return %arg0, %c0_i32, %c0_i32_0 : i32, i32, i32
  }
  func.func @transform_1(%arg0: i32) -> (i32, i32, i32) {
    %c0_i32 = arith.constant 0 : i32
    %c0_i32_0 = arith.constant 0 : i32
    %c0_i32_1 = arith.constant 0 : i32
    return %arg0, %c0_i32, %c0_i32_0 : i32, i32, i32
  }
  func.func @transform_2(%arg0: i32) -> (i32, i32, i32) {
    %c0_i32 = arith.constant 0 : i32
    %c0_i32_0 = arith.constant 0 : i32
    %c0_i32_1 = arith.constant 0 : i32
    return %arg0, %c0_i32, %c0_i32_0 : i32, i32, i32
  }
  func.func @transform_3(%arg0: i32) -> (i32, i32) {
    %c0_i32 = arith.constant 0 : i32
    %c0_i32_0 = arith.constant 0 : i32
    %c0_i32_1 = arith.constant 0 : i32
    return %c0_i32, %c0_i32_0 : i32, i32
  }
  func.func @transform_4(%arg0: i32) -> (i32, i32) {
    %c0_i32 = arith.constant 0 : i32
    %c0_i32_0 = arith.constant 0 : i32
    %c0_i32_1 = arith.constant 0 : i32
    return %c0_i32, %c0_i32_0 : i32, i32
  }
  func.func @transform_5(%arg0: i32) -> (i32, i32) {
    %c0_i32 = arith.constant 0 : i32
    %c0_i32_0 = arith.constant 0 : i32
    %c0_i32_1 = arith.constant 0 : i32
    return %c0_i32, %c0_i32_0 : i32, i32
  }
  func.func @transform_6(%arg0: i32) -> (i32, i32) {
    %c0_i32 = arith.constant 0 : i32
    %c0_i32_0 = arith.constant 0 : i32
    %c0_i32_1 = arith.constant 0 : i32
    return %c0_i32, %c0_i32_0 : i32, i32
  }
  func.func @transform_7(%arg0: i32) -> (i32, i32, i32) {
    %c0_i32 = arith.constant 0 : i32
    %c0_i32_0 = arith.constant 0 : i32
    %c0_i32_1 = arith.constant 0 : i32
    return %arg0, %c0_i32, %c0_i32_0 : i32, i32, i32
  }
}

</mosaic_0001>

<llo_original>
// kernel: tpu_custom_call.1
$region0: #{tpu_custom_call.1}
  #allocation0 [shape = 'u32[]', space=smem, size = 0x4, offset = 0x4, fixed_abs, tag = 'smem constant byte address 0x4 - core index']
  #allocation1 [shape = 'u32[144,128]{1,0:T(1,128)}', space=vmem, size = 0x12000, scoped, tag = 'internal scratch']
  %s0 = inlined_call_operand.hbm [shape: bf16[2,128,256], index: 0, kind: input, shape index: {}]
  %s1 = inlined_call_operand.hbm [shape: bf16[2,128,256], index: 1, kind: input, shape index: {}]
  %s2 = inlined_call_operand.vmem [shape: f32[2,1,128], index: 2, kind: input, shape index: {}]
  %s3 = inlined_call_operand.hbm [shape: bf16[256,256], index: 3, kind: input, shape index: {}]
  %s4 = inlined_call_operand.hbm [shape: f32[1,256], index: 4, kind: input, shape index: {}]
  %s5 = inlined_call_operand.hbm [shape: bf16[256,512], index: 5, kind: input, shape index: {}]
  %s6 = inlined_call_operand.vmem [shape: f32[1,512], index: 6, kind: input, shape index: {}]
  %s7 = inlined_call_operand.hbm [shape: f32[2,128,256], index: 7, kind: output, shape index: {}]
  %s8 = sld [smem:[#allocation0]]
  $region81: #{tpu_custom_call.1} parent=0
    _
  %s10 = ssub.s32 1, %s8
  %s11 = scalar_select 0, %s10, %s8
  $region1: #{tpu_custom_call.1} parent=0
    #allocation2 [shape = 'u8[131072]{0}', space=vmem, size = 0x20000, scoped, tag = 'input window, operand 0']
    #allocation3 [shape = 's32[2]{0}', space=sflag, size = 0x8, scoped, tag = 'scoped memory for tpu_custom_call.1']
    #allocation4 [shape = 's32[2]{0}', space=sflag, size = 0x8, scoped, tag = 'scoped memory for tpu_custom_call.1']
    #allocation5 [shape = 'u8[131072]{0}', space=vmem, size = 0x20000, scoped, tag = 'input window, operand 1']
    #allocation6 [shape = 's32[2]{0}', space=sflag, size = 0x8, scoped, tag = 'scoped memory for tpu_custom_call.1']
    #allocation7 [shape = 'u8[131072]{0}', space=vmem, size = 0x20000, scoped, tag = 'input window, operand 3, single buffered']
    #allocation8 [shape = 'u8[1024]{0}', space=vmem, size = 0x400, scoped, tag = 'input window, operand 4, single buffered']
    #allocation9 [shape = 's32[1]{0}', space=sflag, size = 0x4, scoped, tag = 'scoped memory for tpu_custom_call.1']
    #allocation10 [shape = 'u8[262144]{0}', space=vmem, size = 0x40000, scoped, tag = 'input window, operand 5, single buffered']
    #allocation11 [shape = 'u8[262144]{0}', space=vmem, size = 0x40000, scoped, tag = 'output window, operand 0']
    %12 = vsyncpa [#allocation3], 0
    %s13 = scalar_lea.sflag [#allocation3], 1
    %14 = vsyncpa %s13, 0
    %15 = vsyncpa [#allocation6], 0
    %s16 = scalar_lea.sflag [#allocation6], 1
    %17 = vsyncpa %s16, 0
    %18 = vsyncpa [#allocation9], 0
    %19 = vsyncpa [#allocation4], 0
    %s20 = scalar_lea.sflag [#allocation4], 1
    %21 = vsyncpa %s20, 0
    loop: start=0, step=1, limit=4
    $region2: #{tpu_custom_call.1} parent=1 // loop_pre_header
      _
    $region3: #{tpu_custom_call.1} parent=1 // loop_header
      %s23 = sphi 0, %s27
      %p24 = scmp.ge.s32.totalorder %s23, 4
      %s33 = sphi 0, %s35
      %s36 = sphi 0, %s33
      %s37 = sphi 0, %s36
      %s53 = sphi 0, %s37
      %s59 = sphi 0, %s61
      %s62 = sphi 0, %s59
      %s63 = sphi 0, %s62
      %s79 = sphi 0, %s63
      %s85 = sphi 0, %s87
      %s88 = sphi 0, %s85
      %s89 = sphi 0, %s88
      %s105 = sphi 0, %s89
      %s109 = sphi 0, %s109
      %s111 = sphi 0, %s109
      %s112 = sphi 0, %s111
      %s126 = sphi 0, %s112
      %s130 = sphi 0, %s130
      %s132 = sphi 0, %s130
      %s133 = sphi 0, %s132
      %s147 = sphi 0, %s133
      %s151 = sphi 0, %s151
      %s153 = sphi 0, %s151
      %s154 = sphi 0, %s153
      %s168 = sphi 0, %s154
      %s172 = sphi 0, %s172
      %s174 = sphi 0, %s172
      %s175 = sphi 0, %s174
      %s189 = sphi 0, %s175
      %s195 = sphi 0, %s197
      %s198 = sphi 0, %s195
      %s199 = sphi 0, %s198
      %s215 = sphi 0, %s199
    $region4: #{tpu_custom_call.1} parent=1 // loop_header_branch
      %26 = sbr.rel (%p24) target = $region8
    $region5: #{tpu_custom_call.1} parent=1 // loop_body
      %s28 = ssub.s32 %s23, 1
      %s29 = ssub.s32 %s23, 2
      %s30 = sadd.s32 %s23, 1
      %s31 = ssub.s32 %s23, %s30
      %p32 = scmp.eq.s32.totalorder %s31, 0
      %s34 = sadd.s32 %s33, 1
      %s35 = scalar_select %p32, %s33, %s34
      %p38 = pneg %p32
      %p39 = scmp.eq.s32.totalorder %s23, 1
      %p40 = por %p38, %p39
      %p41 = scmp.ne.s32.totalorder %s33, %s36
      %p42 = scmp.eq.s32.totalorder %s23, 0
      %p43 = por %p41, %p42
      %p44 = scmp.ne.s32.totalorder %s33, %s36
      %p45 = scmp.eq.s32.totalorder %s28, 1
      %p46 = por %p44, %p45
      %p47 = scmp.ne.s32.totalorder %s36, %s37
      %p48 = scmp.eq.s32.totalorder %s28, 0
      %p49 = por %p47, %p48
      %p50 = scmp.ne.s32.totalorder %s36, %s37
      %p51 = scmp.eq.s32.totalorder %s29, 1
      %p52 = por %p50, %p51
      %p54 = scmp.ne.s32.totalorder %s37, %s53
      %p55 = scmp.eq.s32.totalorder %s29, 0
      %p56 = por %p54, %p55
      %s57 = ssub.s32 %s23, %s30
      %p58 = scmp.eq.s32.totalorder %s57, 0
      %s60 = sadd.s32 %s59, 1
      %s61 = scalar_select %p58, %s59, %s60
      %p64 = pneg %p58
      %p65 = scmp.eq.s32.totalorder %s23, 1
      %p66 = por %p64, %p65
      %p67 = scmp.ne.s32.totalorder %s59, %s62
      %p68 = scmp.eq.s32.totalorder %s23, 0
      %p69 = por %p67, %p68
      %p70 = scmp.ne.s32.totalorder %s59, %s62
      %p71 = scmp.eq.s32.totalorder %s28, 1
      %p72 = por %p70, %p71
      %p73 = scmp.ne.s32.totalorder %s62, %s63
      %p74 = scmp.eq.s32.totalorder %s28, 0
      %p75 = por %p73, %p74
      %p76 = scmp.ne.s32.totalorder %s62, %s63
      %p77 = scmp.eq.s32.totalorder %s29, 1
      %p78 = por %p76, %p77
      %p80 = scmp.ne.s32.totalorder %s63, %s79
      %p81 = scmp.eq.s32.totalorder %s29, 0
      %p82 = por %p80, %p81
      %s83 = ssub.s32 %s23, %s30
      %p84 = scmp.eq.s32.totalorder %s83, 0
      %s86 = sadd.s32 %s85, 1
      %s87 = scalar_select %p84, %s85, %s86
      %p90 = pneg %p84
      %p91 = scmp.eq.s32.totalorder %s23, 1
      %p92 = por %p90, %p91
      %p93 = scmp.ne.s32.totalorder %s85, %s88
      %p94 = scmp.eq.s32.totalorder %s23, 0
      %p95 = por %p93, %p94
      %p96 = scmp.ne.s32.totalorder %s85, %s88
      %p97 = scmp.eq.s32.totalorder %s28, 1
      %p98 = por %p96, %p97
      %p99 = scmp.ne.s32.totalorder %s88, %s89
      %p100 = scmp.eq.s32.totalorder %s28, 0
      %p101 = por %p99, %p100
      %p102 = scmp.ne.s32.totalorder %s88, %s89
      %p103 = scmp.eq.s32.totalorder %s29, 1
      %p104 = por %p102, %p103
      %p106 = scmp.ne.s32.totalorder %s89, %s105
      %p107 = scmp.eq.s32.totalorder %s29, 0
      %p108 = por %p106, %p107
      %s110 = sadd.s32 %s109, 1
      %p113 = scmp.eq.s32.totalorder %s23, 1
      %p114 = scmp.ne.s32.totalorder %s109, %s111
      %p115 = scmp.eq.s32.totalorder %s23, 0
      %p116 = por %p114, %p115
      %p117 = scmp.ne.s32.totalorder %s109, %s111
      %p118 = scmp.eq.s32.totalorder %s28, 1
      %p119 = por %p117, %p118
      %p120 = scmp.ne.s32.totalorder %s111, %s112
      %p121 = scmp.eq.s32.totalorder %s28, 0
      %p122 = por %p120, %p121
      %p123 = scmp.ne.s32.totalorder %s111, %s112
      %p124 = scmp.eq.s32.totalorder %s29, 1
      %p125 = por %p123, %p124
      %p127 = scmp.ne.s32.totalorder %s112, %s126
      %p128 = scmp.eq.s32.totalorder %s29, 0
      %p129 = por %p127, %p128
      %s131 = sadd.s32 %s130, 1
      %p134 = scmp.eq.s32.totalorder %s23, 1
      %p135 = scmp.ne.s32.totalorder %s130, %s132
      %p136 = scmp.eq.s32.totalorder %s23, 0
      %p137 = por %p135, %p136
      %p138 = scmp.ne.s32.totalorder %s130, %s132
      %p139 = scmp.eq.s32.totalorder %s28, 1
      %p140 = por %p138, %p139
      %p141 = scmp.ne.s32.totalorder %s132, %s133
      %p142 = scmp.eq.s32.totalorder %s28, 0
      %p143 = por %p141, %p142
      %p144 = scmp.ne.s32.totalorder %s132, %s133
      %p145 = scmp.eq.s32.totalorder %s29, 1
      %p146 = por %p144, %p145
      %p148 = scmp.ne.s32.totalorder %s133, %s147
      %p149 = scmp.eq.s32.totalorder %s29, 0
      %p150 = por %p148, %p149
      %s152 = sadd.s32 %s151, 1
      %p155 = scmp.eq.s32.totalorder %s23, 1
      %p156 = scmp.ne.s32.totalorder %s151, %s153
      %p157 = scmp.eq.s32.totalorder %s23, 0
      %p158 = por %p156, %p157
      %p159 = scmp.ne.s32.totalorder %s151, %s153
      %p160 = scmp.eq.s32.totalorder %s28, 1
      %p161 = por %p159, %p160
      %p162 = scmp.ne.s32.totalorder %s153, %s154
      %p163 = scmp.eq.s32.totalorder %s28, 0
      %p164 = por %p162, %p163
      %p165 = scmp.ne.s32.totalorder %s153, %s154
      %p166 = scmp.eq.s32.totalorder %s29, 1
      %p167 = por %p165, %p166
      %p169 = scmp.ne.s32.totalorder %s154, %s168
      %p170 = scmp.eq.s32.totalorder %s29, 0
      %p171 = por %p169, %p170
      %s173 = sadd.s32 %s172, 1
      %p176 = scmp.eq.s32.totalorder %s23, 1
      %p177 = scmp.ne.s32.totalorder %s172, %s174
      %p178 = scmp.eq.s32.totalorder %s23, 0
      %p179 = por %p177, %p178
      %p180 = scmp.ne.s32.totalorder %s172, %s174
      %p181 = scmp.eq.s32.totalorder %s28, 1
      %p182 = por %p180, %p181
      %p183 = scmp.ne.s32.totalorder %s174, %s175
      %p184 = scmp.eq.s32.totalorder %s28, 0
      %p185 = por %p183, %p184
      %p186 = scmp.ne.s32.totalorder %s174, %s175
      %p187 = scmp.eq.s32.totalorder %s29, 1
      %p188 = por %p186, %p187
      %p190 = scmp.ne.s32.totalorder %s175, %s189
      %p191 = scmp.eq.s32.totalorder %s29, 0
      %p192 = por %p190, %p191
      %s193 = ssub.s32 %s23, %s30
      %p194 = scmp.eq.s32.totalorder %s193, 0
      %s196 = sadd.s32 %s195, 1
      %s197 = scalar_select %p194, %s195, %s196
      %p200 = pneg %p194
      %p201 = scmp.eq.s32.totalorder %s23, 1
      %p202 = por %p200, %p201
      %p203 = scmp.ne.s32.totalorder %s195, %s198
      %p204 = scmp.eq.s32.totalorder %s23, 0
      %p205 = por %p203, %p204
      %p206 = scmp.ne.s32.totalorder %s195, %s198
      %p207 = scmp.eq.s32.totalorder %s28, 1
      %p208 = por %p206, %p207
      %p209 = scmp.ne.s32.totalorder %s198, %s199
      %p210 = scmp.eq.s32.totalorder %s28, 0
      %p211 = por %p209, %p210
      %p212 = scmp.ne.s32.totalorder %s198, %s199
      %p213 = scmp.eq.s32.totalorder %s29, 1
      %p214 = por %p212, %p213
      %p216 = scmp.ne.s32.totalorder %s199, %s215
      %p217 = scmp.eq.s32.totalorder %s29, 0
      %p218 = por %p216, %p217
      %p219 = scmp.le.s32.totalorder 1, %s23
      %p220 = scmp.lt.s32.totalorder %s23, 3
      %p221 = pnand %p219, %p220
      %p222 = pneg %p221
      // Predicated region
      $region9: #{tpu_custom_call.1} parent=5 // pred_check
        _
      $region10: #{tpu_custom_call.1} parent=5 // pred_check_branch
        %224 = sbr.rel (%p221) target = $region12
      $region11: #{tpu_custom_call.1} parent=5 // pred_region
        %s225 = ssub.s32 %s23, 1
        // Predicated region
        $region13: #{tpu_custom_call.1} parent=11 // pred_check
          %p226 = pneg %p122
        $region14: #{tpu_custom_call.1} parent=11 // pred_check_branch
          %228 = sbr.rel (%p226) target = $region16
        $region15: #{tpu_custom_call.1} parent=11 // pred_region
          %s230 = ssub.s32 4096, 4096
          %231 = vsyncadd [#allocation6], %s230
          %s232 = sshll.u32 [#allocation7], 4
          %s233 = int_to_ptr.vmem [resolvable:$true] %s232
          %238 = dma.hbm_to_vmem [thread:$0]  %s3, 4096, %s233, [#allocation6], 128, 128, 8
        $region16: #{tpu_custom_call.1} parent=11 // pred_fallthru
          _
        // Predicated region
        $region17: #{tpu_custom_call.1} parent=11 // pred_check
          %p239 = pneg %p143
        $region18: #{tpu_custom_call.1} parent=11 // pred_check_branch
          %241 = sbr.rel (%p239) target = $region20
        $region19: #{tpu_custom_call.1} parent=11 // pred_region
          %s243 = ssub.s32 32, 32
          %244 = vsyncadd [#allocation9], %s243
          %s246 = sshll.u32 [#allocation8], 4
          %s247 = int_to_ptr.vmem [resolvable:$true] %s246
          %249 = dma.hbm_to_vmem [thread:$0]  %s4, 32, %s247, [#allocation9]
        $region20: #{tpu_custom_call.1} parent=11 // pred_fallthru
          _
        // Predicated region
        $region21: #{tpu_custom_call.1} parent=11 // pred_check
          %p250 = pneg %p164
        $region22: #{tpu_custom_call.1} parent=11 // pred_check_branch
          %252 = sbr.rel (%p250) target = $region24
        $region23: #{tpu_custom_call.1} parent=11 // pred_region
          %s254 = ssub.s32 8192, 8192
          %255 = vsyncadd [#allocation9], %s254
          %s256 = sshll.u32 [#allocation10], 4
          %s257 = int_to_ptr.vmem [resolvable:$true] %s256
          %262 = dma.hbm_to_vmem [thread:$0]  %s5, 8192, %s257, [#allocation9], 256, 256, 16
        $region24: #{tpu_custom_call.1} parent=11 // pred_fallthru
          _
        // Predicated region
        $region25: #{tpu_custom_call.1} parent=11 // pred_check
          %p263 = pneg %p185
        $region26: #{tpu_custom_call.1} parent=11 // pred_check_branch
          %265 = sbr.rel (%p263) target = $region28
        $region27: #{tpu_custom_call.1} parent=11 // pred_region
          _
        $region28: #{tpu_custom_call.1} parent=11 // pred_fallthru
          _
      $region12: #{tpu_custom_call.1} parent=5 // pred_fallthru
        _
      %p266 = scmp.lt.s32.totalorder %s23, 2
      // Predicated region
      $region29: #{tpu_custom_call.1} parent=5 // pred_check
        %p267 = pneg %p266
      $region30: #{tpu_custom_call.1} parent=5 // pred_check_branch
        %269 = sbr.rel (%p267) target = $region32
      $region31: #{tpu_custom_call.1} parent=5 // pred_region
        // Predicated region
        $region33: #{tpu_custom_call.1} parent=31 // pred_check
          %p270 = pneg %p43
        $region34: #{tpu_custom_call.1} parent=31 // pred_check_branch
          %272 = sbr.rel (%p270) target = $region36
        $region35: #{tpu_custom_call.1} parent=31 // pred_region
          %s273 = sand.u32 %s33, 1
          %s274 = scalar_lea.sflag [#allocation3], %s273
          %s275 = sand.u32 %s33, 1
          %s276 = smul.addr %s275, 128
          %s277 = scalar_lea.vmem [#allocation2], %s276
          %s279 = ssub.s32 2048, 2048
          %280 = vsyncadd %s274, %s279
          %s281 = smul.addr %s23, 32
          %s282 = smul.addr %s281, 64
          %s283 = scalar_lea.hbm %s0, %s282
          %s284 = sshll.u32 %s277, 4
          %s285 = int_to_ptr.vmem [resolvable:$true] %s284
          %290 = dma.hbm_to_vmem [thread:$0]  %s283, 2048, %s285, %s274, 128, 128, 8
        $region36: #{tpu_custom_call.1} parent=31 // pred_fallthru
          _
        // Predicated region
        $region37: #{tpu_custom_call.1} parent=31 // pred_check
          %p291 = pneg %p69
        $region38: #{tpu_custom_call.1} parent=31 // pred_check_branch
          %293 = sbr.rel (%p291) target = $region40
        $region39: #{tpu_custom_call.1} parent=31 // pred_region
          %s294 = sand.u32 %s23, 1
          %s295 = scalar_lea.sflag [#allocation6], %s294
          %s296 = sand.u32 %s59, 1
          %s297 = smul.addr %s296, 128
          %s298 = scalar_lea.vmem [#allocation5], %s297
          %s300 = ssub.s32 2048, 2048
          %301 = vsyncadd %s295, %s300
          %s302 = smul.addr %s23, 32
          %s303 = smul.addr %s302, 64
          %s304 = scalar_lea.hbm %s1, %s303
          %s305 = sshll.u32 %s298, 4
          %s306 = int_to_ptr.vmem [resolvable:$true] %s305
          %311 = dma.hbm_to_vmem [thread:$0]  %s304, 2048, %s306, %s295, 128, 128, 8
        $region40: #{tpu_custom_call.1} parent=31 // pred_fallthru
          _
        // Predicated region
        $region41: #{tpu_custom_call.1} parent=31 // pred_check
          %p312 = pneg %p95
        $region42: #{tpu_custom_call.1} parent=31 // pred_check_branch
          %314 = sbr.rel (%p312) target = $region44
        $region43: #{tpu_custom_call.1} parent=31 // pred_region
          %p315 = scmp.lt.s32.totalorder %s23, 1
          %s316 = scalar_select %p315, %s23, 1
          %s317 = scalar_lea.vmem %s2, %s316
        $region44: #{tpu_custom_call.1} parent=31 // pred_fallthru
          _
      $region32: #{tpu_custom_call.1} parent=5 // pred_fallthru
        _
      %p318 = scmp.le.s32.totalorder 1, %s23
      %p319 = scmp.lt.s32.totalorder %s23, 3
      %p320 = pnand %p318, %p319
      %p321 = pneg %p320
      // Predicated region
      $region45: #{tpu_custom_call.1} parent=5 // pred_check
        _
      $region46: #{tpu_custom_call.1} parent=5 // pred_check_branch
        %323 = sbr.rel (%p320) target = $region48
      $region47: #{tpu_custom_call.1} parent=5 // pred_region
        %s324 = ssub.s32 %s23, 1
        %s325 = sand.u32 %s36, 1
        %s326 = scalar_lea.sflag [#allocation3], %s325
        %s327 = sand.u32 %s36, 1
        %s328 = smul.addr %s327, 128
        %s329 = scalar_lea.vmem [#allocation2], %s328
        // Predicated region
        $region49: #{tpu_custom_call.1} parent=47 // pred_check
          %p330 = pneg %p49
        $region50: #{tpu_custom_call.1} parent=47 // pred_check_branch
          %332 = sbr.rel (%p330) target = $region52
        $region51: #{tpu_custom_call.1} parent=47 // pred_region
          %333 = dma.done %s326, 2048
        $region52: #{tpu_custom_call.1} parent=47 // pred_fallthru
          _
        %s334 = sand.u32 %s28, 1
        %s335 = scalar_lea.sflag [#allocation6], %s334
        %s336 = sand.u32 %s62, 1
        %s337 = smul.addr %s336, 128
        %s338 = scalar_lea.vmem [#allocation5], %s337
        // Predicated region
        $region53: #{tpu_custom_call.1} parent=47 // pred_check
          %p339 = pneg %p75
        $region54: #{tpu_custom_call.1} parent=47 // pred_check_branch
          %341 = sbr.rel (%p339) target = $region56
        $region55: #{tpu_custom_call.1} parent=47 // pred_region
          %342 = dma.done %s335, 2048
        $region56: #{tpu_custom_call.1} parent=47 // pred_fallthru
          _
        // Predicated region
        $region57: #{tpu_custom_call.1} parent=47 // pred_check
          %p343 = pneg %p122
        $region58: #{tpu_custom_call.1} parent=47 // pred_check_branch
          %345 = sbr.rel (%p343) target = $region60
        $region59: #{tpu_custom_call.1} parent=47 // pred_region
          %346 = dma.done [#allocation6], 4096
        $region60: #{tpu_custom_call.1} parent=47 // pred_fallthru
          _
        // Predicated region
        $region61: #{tpu_custom_call.1} parent=47 // pred_check
          %p347 = pneg %p143
        $region62: #{tpu_custom_call.1} parent=47 // pred_check_branch
          %349 = sbr.rel (%p347) target = $region64
        $region63: #{tpu_custom_call.1} parent=47 // pred_region
          %350 = dma.done [#allocation9], 32
        $region64: #{tpu_custom_call.1} parent=47 // pred_fallthru
          _
        // Predicated region
        $region65: #{tpu_custom_call.1} parent=47 // pred_check
          %p351 = pneg %p164
        $region66: #{tpu_custom_call.1} parent=47 // pred_check_branch
          %353 = sbr.rel (%p351) target = $region68
        $region67: #{tpu_custom_call.1} parent=47 // pred_region
          %354 = dma.done [#allocation9], 8192
        $region68: #{tpu_custom_call.1} parent=47 // pred_fallthru
          _
        %s355 = sand.u32 %s36, 1
        %s356 = scalar_lea.sflag [#allocation3], %s355
        %s357 = sand.u32 %s36, 1
        %s358 = smul.addr %s357, 128
        %s359 = scalar_lea.vmem [#allocation2], %s358
        %p360 = pneg %p49
        %p361 = pneg %p46
        %s362 = sand.u32 %s28, 1
        %s363 = scalar_lea.sflag [#allocation6], %s362
        %s364 = sand.u32 %s62, 1
        %s365 = smul.addr %s364, 128
        %s366 = scalar_lea.vmem [#allocation5], %s365
        %p367 = pneg %p75
        %p368 = pneg %p72
        %p369 = scmp.lt.s32.totalorder %s28, 1
        %s370 = scalar_select %p369, %s28, 1
        %s371 = scalar_lea.vmem %s2, %s370
        %p372 = pneg %p101
        %p373 = pneg %p98
        %p374 = pneg %p122
        %p375 = pneg %p119
        %p376 = pneg %p143
        %p377 = pneg %p140
        %p378 = pneg %p164
        %p379 = pneg %p161
        %p380 = pneg %p185
        %p381 = pneg %p182
        %p382 = pneg %p211
        %p383 = pneg %p208
        %s384 = sand.u32 %s198, 1
        %s385 = scalar_lea.sflag [#allocation4], %s384
        %s386 = sand.u32 %s198, 1
        %s387 = smul.addr %s386, 256
        %s388 = scalar_lea.vmem [#allocation11], %s387
        %p389 = scmp.lt.s32.totalorder %s28, 1
        %s390 = scalar_select %p389, %s28, 1
        %s391 = scalar_lea.vmem %s2, %s390
        %v393 = vld [vmem:[%s329] sm:$0xff]
        %v394 = vld [vmem:[%s329 + $0x8] sm:$0xff]
        %v395 = vld [vmem:[%s329 + $0x10] sm:$0xff]
        %v396 = vld [vmem:[%s329 + $0x18] sm:$0xff]
        %v397 = vld [vmem:[%s329 + $0x20] sm:$0xff]
        %v398 = vld [vmem:[%s329 + $0x28] sm:$0xff]
        %v399 = vld [vmem:[%s329 + $0x30] sm:$0xff]
        %v400 = vld [vmem:[%s329 + $0x38] sm:$0xff]
        %v401 = vld [vmem:[%s329 + $0x40] sm:$0xff]
        %v402 = vld [vmem:[%s329 + $0x48] sm:$0xff]
        %v403 = vld [vmem:[%s329 + $0x50] sm:$0xff]
        %v404 = vld [vmem:[%s329 + $0x58] sm:$0xff]
        %v405 = vld [vmem:[%s329 + $0x60] sm:$0xff]
        %v406 = vld [vmem:[%s329 + $0x68] sm:$0xff]
        %v407 = vld [vmem:[%s329 + $0x70] sm:$0xff]
        %v408 = vld [vmem:[%s329 + $0x78] sm:$0xff]
        %v409 = vld [vmem:[%s338] sm:$0xff]
        %v410 = vld [vmem:[%s338 + $0x8] sm:$0xff]
        %v411 = vld [vmem:[%s338 + $0x10] sm:$0xff]
        %v412 = vld [vmem:[%s338 + $0x18] sm:$0xff]
        %v413 = vld [vmem:[%s338 + $0x20] sm:$0xff]
        %v414 = vld [vmem:[%s338 + $0x28] sm:$0xff]
        %v415 = vld [vmem:[%s338 + $0x30] sm:$0xff]
        %v416 = vld [vmem:[%s338 + $0x38] sm:$0xff]
        %v417 = vld [vmem:[%s338 + $0x40] sm:$0xff]
        %v418 = vld [vmem:[%s338 + $0x48] sm:$0xff]
        %v419 = vld [vmem:[%s338 + $0x50] sm:$0xff]
        %v420 = vld [vmem:[%s338 + $0x58] sm:$0xff]
        %v421 = vld [vmem:[%s338 + $0x60] sm:$0xff]
        %v422 = vld [vmem:[%s338 + $0x68] sm:$0xff]
        %v423 = vld [vmem:[%s338 + $0x70] sm:$0xff]
        %v424 = vld [vmem:[%s338 + $0x78] sm:$0xff]
        %v425 = vld [vmem:[%s391] sm:$0x1]
        %v426 = vld [vmem:[#allocation7] sm:$0xff]
        %v427 = vld [vmem:[#allocation7 + $0x8] sm:$0xff]
        %v428 = vld [vmem:[#allocation7 + $0x10] sm:$0xff]
        %v429 = vld [vmem:[#allocation7 + $0x18] sm:$0xff]
        %v430 = vld [vmem:[#allocation7 + $0x20] sm:$0xff]
        %v431 = vld [vmem:[#allocation7 + $0x28] sm:$0xff]
        %v432 = vld [vmem:[#allocation7 + $0x30] sm:$0xff]
        %v433 = vld [vmem:[#allocation7 + $0x38] sm:$0xff]
        %v434 = vld [vmem:[#allocation7 + $0x40] sm:$0xff]
        %v435 = vld [vmem:[#allocation7 + $0x48] sm:$0xff]
        %v436 = vld [vmem:[#allocation7 + $0x50] sm:$0xff]
        %v437 = vld [vmem:[#allocation7 + $0x58] sm:$0xff]
        %v438 = vld [vmem:[#allocation7 + $0x60] sm:$0xff]
        %v439 = vld [vmem:[#allocation7 + $0x68] sm:$0xff]
        %v440 = vld [vmem:[#allocation7 + $0x70] sm:$0xff]
        %v441 = vld [vmem:[#allocation7 + $0x78] sm:$0xff]
        %v442 = vld [vmem:[#allocation7 + $0x80] sm:$0xff]
        %v443 = vld [vmem:[#allocation7 + $0x88] sm:$0xff]
        %v444 = vld [vmem:[#allocation7 + $0x90] sm:$0xff]
        %v445 = vld [vmem:[#allocation7 + $0x98] sm:$0xff]
        %v446 = vld [vmem:[#allocation7 + $0xa0] sm:$0xff]
        %v447 = vld [vmem:[#allocation7 + $0xa8] sm:$0xff]
        %v448 = vld [vmem:[#allocation7 + $0xb0] sm:$0xff]
        %v449 = vld [vmem:[#allocation7 + $0xb8] sm:$0xff]
        %v450 = vld [vmem:[#allocation7 + $0xc0] sm:$0xff]
        %v451 = vld [vmem:[#allocation7 + $0xc8] sm:$0xff]
        %v452 = vld [vmem:[#allocation7 + $0xd0] sm:$0xff]
        %v453 = vld [vmem:[#allocation7 + $0xd8] sm:$0xff]
        %v454 = vld [vmem:[#allocation7 + $0xe0] sm:$0xff]
        %v455 = vld [vmem:[#allocation7 + $0xe8] sm:$0xff]
        %v456 = vld [vmem:[#allocation7 + $0xf0] sm:$0xff]
        %v457 = vld [vmem:[#allocation7 + $0xf8] sm:$0xff]
        %v458 = vld [vmem:[#allocation8] sm:$0x3]
        %v460 = vlaneseq
        %v461 = vshrl.u32 %v460, 7
        %v462 = vsub.s32 0, %v461
        %v463 = vrot.slane %v458, %v462
        %v464 = vlaneseq
        %v465 = vshrl.u32 %v464, 7
        %v466 = vsub.s32 1, %v465
        %v467 = vrot.slane %v458, %v466
        %v486 = vunpack.c.l.b16 %v393
        %v487 = vunpack.c.h.b16 %v393
        %v488 = vunpack.c.l.b16 %v394
        %v489 = vunpack.c.h.b16 %v394
        %v490 = vunpack.c.l.b16 %v395
        %v491 = vunpack.c.h.b16 %v395
        %v492 = vunpack.c.l.b16 %v396
        %v493 = vunpack.c.h.b16 %v396
        %v494 = vunpack.c.l.b16 %v397
        %v495 = vunpack.c.h.b16 %v397
        %v496 = vunpack.c.l.b16 %v398
        %v497 = vunpack.c.h.b16 %v398
        %v498 = vunpack.c.l.b16 %v399
        %v499 = vunpack.c.h.b16 %v399
        %v500 = vunpack.c.l.b16 %v400
        %v501 = vunpack.c.h.b16 %v400
        %v502 = vunpack.c.l.b16 %v401
        %v503 = vunpack.c.h.b16 %v401
        %v504 = vunpack.c.l.b16 %v402
        %v505 = vunpack.c.h.b16 %v402
        %v506 = vunpack.c.l.b16 %v403
        %v507 = vunpack.c.h.b16 %v403
        %v508 = vunpack.c.l.b16 %v404
        %v509 = vunpack.c.h.b16 %v404
        %v510 = vunpack.c.l.b16 %v405
        %v511 = vunpack.c.h.b16 %v405
        %v512 = vunpack.c.l.b16 %v406
        %v513 = vunpack.c.h.b16 %v406
        %v514 = vunpack.c.l.b16 %v407
        %v515 = vunpack.c.h.b16 %v407
        %v516 = vunpack.c.l.b16 %v408
        %v517 = vunpack.c.h.b16 %v408
        %v518 = vpack.c.b16 %v488, %v486
        %v519 = vpack.c.b16 %v489, %v487
        %v520 = vpack.c.b16 %v492, %v490
        %v521 = vpack.c.b16 %v493, %v491
        %v522 = vpack.c.b16 %v496, %v494
        %v523 = vpack.c.b16 %v497, %v495
        %v524 = vpack.c.b16 %v500, %v498
        %v525 = vpack.c.b16 %v501, %v499
        %v526 = vpack.c.b16 %v504, %v502
        %v527 = vpack.c.b16 %v505, %v503
        %v528 = vpack.c.b16 %v508, %v506
        %v529 = vpack.c.b16 %v509, %v507
        %v530 = vpack.c.b16 %v512, %v510
        %v531 = vpack.c.b16 %v513, %v511
        %v532 = vpack.c.b16 %v516, %v514
        %v533 = vpack.c.b16 %v517, %v515
        %v582 = vunpack.c.l.b16 %v426
        %v583 = vunpack.c.h.b16 %v426
        %v584 = vunpack.c.l.b16 %v427
        %v585 = vunpack.c.h.b16 %v427
        %v586 = vunpack.c.l.b16 %v428
        %v587 = vunpack.c.h.b16 %v428
        %v588 = vunpack.c.l.b16 %v429
        %v589 = vunpack.c.h.b16 %v429
        %v590 = vunpack.c.l.b16 %v430
        %v591 = vunpack.c.h.b16 %v430
        %v592 = vunpack.c.l.b16 %v431
        %v593 = vunpack.c.h.b16 %v431
        %v594 = vunpack.c.l.b16 %v432
        %v595 = vunpack.c.h.b16 %v432
        %v596 = vunpack.c.l.b16 %v433
        %v597 = vunpack.c.h.b16 %v433
        %v598 = vunpack.c.l.b16 %v434
        %v599 = vunpack.c.h.b16 %v434
        %v600 = vunpack.c.l.b16 %v435
        %v601 = vunpack.c.h.b16 %v435
        %v602 = vunpack.c.l.b16 %v436
        %v603 = vunpack.c.h.b16 %v436
        %v604 = vunpack.c.l.b16 %v437
        %v605 = vunpack.c.h.b16 %v437
        %v606 = vunpack.c.l.b16 %v438
        %v607 = vunpack.c.h.b16 %v438
        %v608 = vunpack.c.l.b16 %v439
        %v609 = vunpack.c.h.b16 %v439
        %v610 = vunpack.c.l.b16 %v440
        %v611 = vunpack.c.h.b16 %v440
        %v612 = vunpack.c.l.b16 %v441
        %v613 = vunpack.c.h.b16 %v441
        %v614 = vunpack.c.l.b16 %v442
        %v615 = vunpack.c.h.b16 %v442
        %v616 = vunpack.c.l.b16 %v443
        %v617 = vunpack.c.h.b16 %v443
        %v618 = vunpack.c.l.b16 %v444
        %v619 = vunpack.c.h.b16 %v444
        %v620 = vunpack.c.l.b16 %v445
        %v621 = vunpack.c.h.b16 %v445
        %v622 = vunpack.c.l.b16 %v446
        %v623 = vunpack.c.h.b16 %v446
        %v624 = vunpack.c.l.b16 %v447
        %v625 = vunpack.c.h.b16 %v447
        %v626 = vunpack.c.l.b16 %v448
        %v627 = vunpack.c.h.b16 %v448
        %v628 = vunpack.c.l.b16 %v449
        %v629 = vunpack.c.h.b16 %v449
        %v630 = vunpack.c.l.b16 %v450
        %v631 = vunpack.c.h.b16 %v450
        %v632 = vunpack.c.l.b16 %v451
        %v633 = vunpack.c.h.b16 %v451
        %v634 = vunpack.c.l.b16 %v452
        %v635 = vunpack.c.h.b16 %v452
        %v636 = vunpack.c.l.b16 %v453
        %v637 = vunpack.c.h.b16 %v453
        %v638 = vunpack.c.l.b16 %v454
        %v639 = vunpack.c.h.b16 %v454
        %v640 = vunpack.c.l.b16 %v455
        %v641 = vunpack.c.h.b16 %v455
        %v642 = vunpack.c.l.b16 %v456
        %v643 = vunpack.c.h.b16 %v456
        %v644 = vunpack.c.l.b16 %v457
        %v645 = vunpack.c.h.b16 %v457
        %v646 = vpack.c.b16 %v584, %v582
        %v647 = vpack.c.b16 %v585, %v583
        %v648 = vpack.c.b16 %v588, %v586
        %v649 = vpack.c.b16 %v589, %v587
        %v650 = vpack.c.b16 %v592, %v590
        %v651 = vpack.c.b16 %v593, %v591
        %v652 = vpack.c.b16 %v596, %v594
        %v653 = vpack.c.b16 %v597, %v595
        %v654 = vpack.c.b16 %v600, %v598
        %v655 = vpack.c.b16 %v601, %v599
        %v656 = vpack.c.b16 %v604, %v602
        %v657 = vpack.c.b16 %v605, %v603
        %v658 = vpack.c.b16 %v608, %v606
        %v659 = vpack.c.b16 %v609, %v607
        %v660 = vpack.c.b16 %v612, %v610
        %v661 = vpack.c.b16 %v613, %v611
        %v662 = vpack.c.b16 %v616, %v614
        %v663 = vpack.c.b16 %v617, %v615
        %v664 = vpack.c.b16 %v620, %v618
        %v665 = vpack.c.b16 %v621, %v619
        %v666 = vpack.c.b16 %v624, %v622
        %v667 = vpack.c.b16 %v625, %v623
        %v668 = vpack.c.b16 %v628, %v626
        %v669 = vpack.c.b16 %v629, %v627
        %v670 = vpack.c.b16 %v632, %v630
        %v671 = vpack.c.b16 %v633, %v631
        %v672 = vpack.c.b16 %v636, %v634
        %v673 = vpack.c.b16 %v637, %v635
        %v674 = vpack.c.b16 %v640, %v638
        %v675 = vpack.c.b16 %v641, %v639
        %v676 = vpack.c.b16 %v644, %v642
        %v677 = vpack.c.b16 %v645, %v643
        %710 = vmatprep.subr.bf16.mxu0 %v661
        %711 = vmatpush1.bf16.msra.mxu0 %v660
        %712 = vmatprep.subr.bf16.mxu0 %v659
        %713 = vmatpush1.bf16.msra.mxu0 %v658
        %714 = vmatprep.subr.bf16.mxu0 %v657
        %715 = vmatpush1.bf16.msra.mxu0 %v656
        %716 = vmatprep.subr.bf16.mxu0 %v655
        %717 = vmatpush1.bf16.msra.mxu0 %v654
        %718 = vmatprep.subr.bf16.mxu0 %v653
        %719 = vmatpush1.bf16.msra.mxu0 %v652
        %720 = vmatprep.subr.bf16.mxu0 %v651
        %721 = vmatpush1.bf16.msra.mxu0 %v650
        %722 = vmatprep.subr.bf16.mxu0 %v649
        %723 = vmatpush1.bf16.msra.mxu0 %v648
        %724 = vmatprep.subr.bf16.mxu0 %v647
        %725 = vmatpush1.bf16.msra.mxu0 %v646
        %726 = vmatprep.subr.bf16.mxu0 %v677
        %727 = vmatpush2.bf16.msra.mxu0 %v676
        %728 = vmatprep.subr.bf16.mxu0 %v675
        %729 = vmatpush2.bf16.msra.mxu0 %v674
        %730 = vmatprep.subr.bf16.mxu0 %v673
        %731 = vmatpush2.bf16.msra.mxu0 %v672
        %732 = vmatprep.subr.bf16.mxu0 %v671
        %733 = vmatpush2.bf16.msra.mxu0 %v670
        %734 = vmatprep.subr.bf16.mxu0 %v669
        %735 = vmatpush2.bf16.msra.mxu0 %v668
        %736 = vmatprep.subr.bf16.mxu0 %v667
        %737 = vmatpush2.bf16.msra.mxu0 %v666
        %738 = vmatprep.subr.bf16.mxu0 %v665
        %739 = vmatpush2.bf16.msra.mxu0 %v664
        %740 = vmatprep.subr.bf16.mxu0 %v663
        %741 = vmatpush2.bf16.msra.mxu0 %v662
        %742 = vmatprep.mubr.bf16.mxu0 %v519
        %743 = vmatmul.mubr.bf16.gmra.mxu0 %v518
        %v744 = vpop.f32.mrf.mxu0
        %v745 = vadd.f32 %v463, %v744
        %v746 = vpop.f32.mrf.mxu0
        %v747 = vadd.f32 %v467, %v746
        %v748 = vpop.f32.mrf.mxu0
        %v749 = vadd.f32 %v463, %v748
        %v750 = vpop.f32.mrf.mxu0
        %v751 = vadd.f32 %v467, %v750
        %752 = vmatprep.mubr.bf16.mxu0 %v521
        %753 = vmatmul.mubr.bf16.gmra.mxu0 %v520
        %v754 = vpop.f32.mrf.mxu0
        %v755 = vadd.f32 %v463, %v754
        %v756 = vpop.f32.mrf.mxu0
        %v757 = vadd.f32 %v467, %v756
        %v758 = vpop.f32.mrf.mxu0
        %v759 = vadd.f32 %v463, %v758
        %v760 = vpop.f32.mrf.mxu0
        %v761 = vadd.f32 %v467, %v760
        %762 = vmatprep.mubr.bf16.mxu0 %v523
        %763 = vmatmul.mubr.bf16.gmra.mxu0 %v522
        %v764 = vpop.f32.mrf.mxu0
        %v765 = vadd.f32 %v463, %v764
        %v766 = vpop.f32.mrf.mxu0
        %v767 = vadd.f32 %v467, %v766
        %v768 = vpop.f32.mrf.mxu0
        %v769 = vadd.f32 %v463, %v768
        %v770 = vpop.f32.mrf.mxu0
        %v771 = vadd.f32 %v467, %v770
        %772 = vmatprep.mubr.bf16.mxu0 %v525
        %773 = vmatmul.mubr.bf16.gmra.mxu0 %v524
        %v774 = vpop.f32.mrf.mxu0
        %v775 = vadd.f32 %v463, %v774
        %v776 = vpop.f32.mrf.mxu0
        %v777 = vadd.f32 %v467, %v776
        %v778 = vpop.f32.mrf.mxu0
        %v779 = vadd.f32 %v463, %v778
        %v780 = vpop.f32.mrf.mxu0
        %v781 = vadd.f32 %v467, %v780
        %782 = vmatprep.mubr.bf16.mxu0 %v527
        %783 = vmatmul.mubr.bf16.gmra.mxu0 %v526
        %v784 = vpop.f32.mrf.mxu0
        %v785 = vadd.f32 %v463, %v784
        %v786 = vpop.f32.mrf.mxu0
        %v787 = vadd.f32 %v467, %v786
        %v788 = vpop.f32.mrf.mxu0
        %v789 = vadd.f32 %v463, %v788
        %v790 = vpop.f32.mrf.mxu0
        %v791 = vadd.f32 %v467, %v790
        %792 = vmatprep.mubr.bf16.mxu0 %v529
        %793 = vmatmul.mubr.bf16.gmra.mxu0 %v528
        %v794 = vpop.f32.mrf.mxu0
        %v795 = vadd.f32 %v463, %v794
        %v796 = vpop.f32.mrf.mxu0
        %v797 = vadd.f32 %v467, %v796
        %v798 = vpop.f32.mrf.mxu0
        %v799 = vadd.f32 %v463, %v798
        %v800 = vpop.f32.mrf.mxu0
        %v801 = vadd.f32 %v467, %v800
        %802 = vmatprep.mubr.bf16.mxu0 %v531
        %803 = vmatmul.mubr.bf16.gmra.mxu0 %v530
        %v804 = vpop.f32.mrf.mxu0
        %v805 = vadd.f32 %v463, %v804
        %v806 = vpop.f32.mrf.mxu0
        %v807 = vadd.f32 %v467, %v806
        %v808 = vpop.f32.mrf.mxu0
        %v809 = vadd.f32 %v463, %v808
        %v810 = vpop.f32.mrf.mxu0
        %v811 = vadd.f32 %v467, %v810
        %812 = vmatprep.mubr.bf16.mxu0 %v533
        %813 = vmatmul.mubr.bf16.gmra.mxu0 %v532
        %v814 = vpop.f32.mrf.mxu0
        %v815 = vadd.f32 %v463, %v814
        %v816 = vpop.f32.mrf.mxu0
        %v817 = vadd.f32 %v467, %v816
        %v818 = vpop.f32.mrf.mxu0
        %v819 = vadd.f32 %v463, %v818
        %v820 = vpop.f32.mrf.mxu0
        %v821 = vadd.f32 %v467, %v820
        %822 = vdwg.mxu0
        %v823 = vld [vmem:[#allocation10] sm:$0xff]
        %v824 = vld [vmem:[#allocation10 + $0x8] sm:$0xff]
        %v825 = vld [vmem:[#allocation10 + $0x10] sm:$0xff]
        %v826 = vld [vmem:[#allocation10 + $0x18] sm:$0xff]
        %v827 = vld [vmem:[#allocation10 + $0x20] sm:$0xff]
        %v828 = vld [vmem:[#allocation10 + $0x28] sm:$0xff]
        %v829 = vld [vmem:[#allocation10 + $0x30] sm:$0xff]
        %v830 = vld [vmem:[#allocation10 + $0x38] sm:$0xff]
        %v831 = vld [vmem:[#allocation10 + $0x40] sm:$0xff]
        %v832 = vld [vmem:[#allocation10 + $0x48] sm:$0xff]
        %v833 = vld [vmem:[#allocation10 + $0x50] sm:$0xff]
        %v834 = vld [vmem:[#allocation10 + $0x58] sm:$0xff]
        %v835 = vld [vmem:[#allocation10 + $0x60] sm:$0xff]
        %v836 = vld [vmem:[#allocation10 + $0x68] sm:$0xff]
        %v837 = vld [vmem:[#allocation10 + $0x70] sm:$0xff]
        %v838 = vld [vmem:[#allocation10 + $0x78] sm:$0xff]
        %v839 = vld [vmem:[#allocation10 + $0x80] sm:$0xff]
        %v840 = vld [vmem:[#allocation10 + $0x88] sm:$0xff]
        %v841 = vld [vmem:[#allocation10 + $0x90] sm:$0xff]
        %v842 = vld [vmem:[#allocation10 + $0x98] sm:$0xff]
        %v843 = vld [vmem:[#allocation10 + $0xa0] sm:$0xff]
        %v844 = vld [vmem:[#allocation10 + $0xa8] sm:$0xff]
        %v845 = vld [vmem:[#allocation10 + $0xb0] sm:$0xff]
        %v846 = vld [vmem:[#allocation10 + $0xb8] sm:$0xff]
        %v847 = vld [vmem:[#allocation10 + $0xc0] sm:$0xff]
        %v848 = vld [vmem:[#allocation10 + $0xc8] sm:$0xff]
        %v849 = vld [vmem:[#allocation10 + $0xd0] sm:$0xff]
        %v850 = vld [vmem:[#allocation10 + $0xd8] sm:$0xff]
        %v851 = vld [vmem:[#allocation10 + $0xe0] sm:$0xff]
        %v852 = vld [vmem:[#allocation10 + $0xe8] sm:$0xff]
        %v853 = vld [vmem:[#allocation10 + $0xf0] sm:$0xff]
        %v854 = vld [vmem:[#allocation10 + $0xf8] sm:$0xff]
        %v855 = vld [vmem:[#allocation10 + $0x100] sm:$0xff]
        %v856 = vld [vmem:[#allocation10 + $0x108] sm:$0xff]
        %v857 = vld [vmem:[#allocation10 + $0x110] sm:$0xff]
        %v858 = vld [vmem:[#allocation10 + $0x118] sm:$0xff]
        %v859 = vld [vmem:[#allocation10 + $0x120] sm:$0xff]
        %v860 = vld [vmem:[#allocation10 + $0x128] sm:$0xff]
        %v861 = vld [vmem:[#allocation10 + $0x130] sm:$0xff]
        %v862 = vld [vmem:[#allocation10 + $0x138] sm:$0xff]
        %v863 = vld [vmem:[#allocation10 + $0x140] sm:$0xff]
        %v864 = vld [vmem:[#allocation10 + $0x148] sm:$0xff]
        %v865 = vld [vmem:[#allocation10 + $0x150] sm:$0xff]
        %v866 = vld [vmem:[#allocation10 + $0x158] sm:$0xff]
        %v867 = vld [vmem:[#allocation10 + $0x160] sm:$0xff]
        %v868 = vld [vmem:[#allocation10 + $0x168] sm:$0xff]
        %v869 = vld [vmem:[#allocation10 + $0x170] sm:$0xff]
        %v870 = vld [vmem:[#allocation10 + $0x178] sm:$0xff]
        %v871 = vld [vmem:[#allocation10 + $0x180] sm:$0xff]
        %v872 = vld [vmem:[#allocation10 + $0x188] sm:$0xff]
        %v873 = vld [vmem:[#allocation10 + $0x190] sm:$0xff]
        %v874 = vld [vmem:[#allocation10 + $0x198] sm:$0xff]
        %v875 = vld [vmem:[#allocation10 + $0x1a0] sm:$0xff]
        %v876 = vld [vmem:[#allocation10 + $0x1a8] sm:$0xff]
        %v877 = vld [vmem:[#allocation10 + $0x1b0] sm:$0xff]
        %v878 = vld [vmem:[#allocation10 + $0x1b8] sm:$0xff]
        %v879 = vld [vmem:[#allocation10 + $0x1c0] sm:$0xff]
        %v880 = vld [vmem:[#allocation10 + $0x1c8] sm:$0xff]
        %v881 = vld [vmem:[#allocation10 + $0x1d0] sm:$0xff]
        %v882 = vld [vmem:[#allocation10 + $0x1d8] sm:$0xff]
        %v883 = vld [vmem:[#allocation10 + $0x1e0] sm:$0xff]
        %v884 = vld [vmem:[#allocation10 + $0x1e8] sm:$0xff]
        %v885 = vld [vmem:[#allocation10 + $0x1f0] sm:$0xff]
        %v886 = vld [vmem:[#allocation10 + $0x1f8] sm:$0xff]
        %v887 = vld [vmem:[%s6] sm:$0xf]
        %v889 = vlaneseq
        %v890 = vshrl.u32 %v889, 7
        %v891 = vsub.s32 0, %v890
        %v892 = vrot.slane %v887, %v891
        %v893 = vlaneseq
        %v894 = vshrl.u32 %v893, 7
        %v895 = vsub.s32 1, %v894
        %v896 = vrot.slane %v887, %v895
        %v897 = vlaneseq
        %v898 = vshrl.u32 %v897, 7
        %v899 = vsub.s32 2, %v898
        %v900 = vrot.slane %v887, %v899
        %v901 = vlaneseq
        %v902 = vshrl.u32 %v901, 7
        %v903 = vsub.s32 3, %v902
        %v904 = vrot.slane %v887, %v903
        %v925 = vunpack.c.l.b16 %v409
        %v926 = vunpack.c.h.b16 %v409
        %v927 = vunpack.c.l.b16 %v410
        %v928 = vunpack.c.h.b16 %v410
        %v929 = vunpack.c.l.b16 %v411
        %v930 = vunpack.c.h.b16 %v411
        %v931 = vunpack.c.l.b16 %v412
        %v932 = vunpack.c.h.b16 %v412
        %v933 = vunpack.c.l.b16 %v413
        %v934 = vunpack.c.h.b16 %v413
        %v935 = vunpack.c.l.b16 %v414
        %v936 = vunpack.c.h.b16 %v414
        %v937 = vunpack.c.l.b16 %v415
        %v938 = vunpack.c.h.b16 %v415
        %v939 = vunpack.c.l.b16 %v416
        %v940 = vunpack.c.h.b16 %v416
        %v941 = vunpack.c.l.b16 %v417
        %v942 = vunpack.c.h.b16 %v417
        %v943 = vunpack.c.l.b16 %v418
        %v944 = vunpack.c.h.b16 %v418
        %v945 = vunpack.c.l.b16 %v419
        %v946 = vunpack.c.h.b16 %v419
        %v947 = vunpack.c.l.b16 %v420
        %v948 = vunpack.c.h.b16 %v420
        %v949 = vunpack.c.l.b16 %v421
        %v950 = vunpack.c.h.b16 %v421
        %v951 = vunpack.c.l.b16 %v422
        %v952 = vunpack.c.h.b16 %v422
        %v953 = vunpack.c.l.b16 %v423
        %v954 = vunpack.c.h.b16 %v423
        %v955 = vunpack.c.l.b16 %v424
        %v956 = vunpack.c.h.b16 %v424
        %v957 = vpack.c.b16 %v927, %v925
        %v958 = vpack.c.b16 %v928, %v926
        %v959 = vpack.c.b16 %v931, %v929
        %v960 = vpack.c.b16 %v932, %v930
        %v961 = vpack.c.b16 %v935, %v933
        %v962 = vpack.c.b16 %v936, %v934
        %v963 = vpack.c.b16 %v939, %v937
        %v964 = vpack.c.b16 %v940, %v938
        %v965 = vpack.c.b16 %v943, %v941
        %v966 = vpack.c.b16 %v944, %v942
        %v967 = vpack.c.b16 %v947, %v945
        %v968 = vpack.c.b16 %v948, %v946
        %v969 = vpack.c.b16 %v951, %v949
        %v970 = vpack.c.b16 %v952, %v950
        %v971 = vpack.c.b16 %v955, %v953
        %v972 = vpack.c.b16 %v956, %v954
        %v1053 = vunpack.c.l.b16 %v823
        %v1054 = vunpack.c.h.b16 %v823
        %v1055 = vunpack.c.l.b16 %v824
        %v1056 = vunpack.c.h.b16 %v824
        %v1057 = vunpack.c.l.b16 %v825
        %v1058 = vunpack.c.h.b16 %v825
        %v1059 = vunpack.c.l.b16 %v826
        %v1060 = vunpack.c.h.b16 %v826
        %v1061 = vunpack.c.l.b16 %v827
        %v1062 = vunpack.c.h.b16 %v827
        %v1063 = vunpack.c.l.b16 %v828
        %v1064 = vunpack.c.h.b16 %v828
        %v1065 = vunpack.c.l.b16 %v829
        %v1066 = vunpack.c.h.b16 %v829
        %v1067 = vunpack.c.l.b16 %v830
        %v1068 = vunpack.c.h.b16 %v830
        %v1069 = vunpack.c.l.b16 %v831
        %v1070 = vunpack.c.h.b16 %v831
        %v1071 = vunpack.c.l.b16 %v832
        %v1072 = vunpack.c.h.b16 %v832
        %v1073 = vunpack.c.l.b16 %v833
        %v1074 = vunpack.c.h.b16 %v833
        %v1075 = vunpack.c.l.b16 %v834
        %v1076 = vunpack.c.h.b16 %v834
        %v1077 = vunpack.c.l.b16 %v835
        %v1078 = vunpack.c.h.b16 %v835
        %v1079 = vunpack.c.l.b16 %v836
        %v1080 = vunpack.c.h.b16 %v836
        %v1081 = vunpack.c.l.b16 %v837
        %v1082 = vunpack.c.h.b16 %v837
        %v1083 = vunpack.c.l.b16 %v838
        %v1084 = vunpack.c.h.b16 %v838
        %v1085 = vunpack.c.l.b16 %v839
        %v1086 = vunpack.c.h.b16 %v839
        %v1087 = vunpack.c.l.b16 %v840
        %v1088 = vunpack.c.h.b16 %v840
        %v1089 = vunpack.c.l.b16 %v841
        %v1090 = vunpack.c.h.b16 %v841
        %v1091 = vunpack.c.l.b16 %v842
        %v1092 = vunpack.c.h.b16 %v842
        %v1093 = vunpack.c.l.b16 %v843
        %v1094 = vunpack.c.h.b16 %v843
        %v1095 = vunpack.c.l.b16 %v844
        %v1096 = vunpack.c.h.b16 %v844
        %v1097 = vunpack.c.l.b16 %v845
        %v1098 = vunpack.c.h.b16 %v845
        %v1099 = vunpack.c.l.b16 %v846
        %v1100 = vunpack.c.h.b16 %v846
        %v1101 = vunpack.c.l.b16 %v847
        %v1102 = vunpack.c.h.b16 %v847
        %v1103 = vunpack.c.l.b16 %v848
        %v1104 = vunpack.c.h.b16 %v848
        %v1105 = vunpack.c.l.b16 %v849
        %v1106 = vunpack.c.h.b16 %v849
        %v1107 = vunpack.c.l.b16 %v850
        %v1108 = vunpack.c.h.b16 %v850
        %v1109 = vunpack.c.l.b16 %v851
        %v1110 = vunpack.c.h.b16 %v851
        %v1111 = vunpack.c.l.b16 %v852
        %v1112 = vunpack.c.h.b16 %v852
        %v1113 = vunpack.c.l.b16 %v853
        %v1114 = vunpack.c.h.b16 %v853
        %v1115 = vunpack.c.l.b16 %v854
        %v1116 = vunpack.c.h.b16 %v854
        %v1117 = vunpack.c.l.b16 %v855
        %v1118 = vunpack.c.h.b16 %v855
        %v1119 = vunpack.c.l.b16 %v856
        %v1120 = vunpack.c.h.b16 %v856
        %v1121 = vunpack.c.l.b16 %v857
        %v1122 = vunpack.c.h.b16 %v857
        %v1123 = vunpack.c.l.b16 %v858
        %v1124 = vunpack.c.h.b16 %v858
        %v1125 = vunpack.c.l.b16 %v859
        %v1126 = vunpack.c.h.b16 %v859
        %v1127 = vunpack.c.l.b16 %v860
        %v1128 = vunpack.c.h.b16 %v860
        %v1129 = vunpack.c.l.b16 %v861
        %v1130 = vunpack.c.h.b16 %v861
        %v1131 = vunpack.c.l.b16 %v862
        %v1132 = vunpack.c.h.b16 %v862
        %v1133 = vunpack.c.l.b16 %v863
        %v1134 = vunpack.c.h.b16 %v863
        %v1135 = vunpack.c.l.b16 %v864
        %v1136 = vunpack.c.h.b16 %v864
        %v1137 = vunpack.c.l.b16 %v865
        %v1138 = vunpack.c.h.b16 %v865
        %v1139 = vunpack.c.l.b16 %v866
        %v1140 = vunpack.c.h.b16 %v866
        %v1141 = vunpack.c.l.b16 %v867
        %v1142 = vunpack.c.h.b16 %v867
        %v1143 = vunpack.c.l.b16 %v868
        %v1144 = vunpack.c.h.b16 %v868
        %v1145 = vunpack.c.l.b16 %v869
        %v1146 = vunpack.c.h.b16 %v869
        %v1147 = vunpack.c.l.b16 %v870
        %v1148 = vunpack.c.h.b16 %v870
        %v1149 = vunpack.c.l.b16 %v871
        %v1150 = vunpack.c.h.b16 %v871
        %v1151 = vunpack.c.l.b16 %v872
        %v1152 = vunpack.c.h.b16 %v872
        %v1153 = vunpack.c.l.b16 %v873
        %v1154 = vunpack.c.h.b16 %v873
        %v1155 = vunpack.c.l.b16 %v874
        %v1156 = vunpack.c.h.b16 %v874
        %v1157 = vunpack.c.l.b16 %v875
        %v1158 = vunpack.c.h.b16 %v875
        %v1159 = vunpack.c.l.b16 %v876
        %v1160 = vunpack.c.h.b16 %v876
        %v1161 = vunpack.c.l.b16 %v877
        %v1162 = vunpack.c.h.b16 %v877
        %v1163 = vunpack.c.l.b16 %v878
        %v1164 = vunpack.c.h.b16 %v878
        %v1165 = vunpack.c.l.b16 %v879
        %v1166 = vunpack.c.h.b16 %v879
        %v1167 = vunpack.c.l.b16 %v880
        %v1168 = vunpack.c.h.b16 %v880
        %v1169 = vunpack.c.l.b16 %v881
        %v1170 = vunpack.c.h.b16 %v881
        %v1171 = vunpack.c.l.b16 %v882
        %v1172 = vunpack.c.h.b16 %v882
        %v1173 = vunpack.c.l.b16 %v883
        %v1174 = vunpack.c.h.b16 %v883
        %v1175 = vunpack.c.l.b16 %v884
        %v1176 = vunpack.c.h.b16 %v884
        %v1177 = vunpack.c.l.b16 %v885
        %v1178 = vunpack.c.h.b16 %v885
        %v1179 = vunpack.c.l.b16 %v886
        %v1180 = vunpack.c.h.b16 %v886
        %v1181 = vpack.c.b16 %v1057, %v1053
        %v1182 = vpack.c.b16 %v1058, %v1054
        %v1183 = vpack.c.b16 %v1059, %v1055
        %v1184 = vpack.c.b16 %v1060, %v1056
        %v1185 = vpack.c.b16 %v1065, %v1061
        %v1186 = vpack.c.b16 %v1066, %v1062
        %v1187 = vpack.c.b16 %v1067, %v1063
        %v1188 = vpack.c.b16 %v1068, %v1064
        %v1189 = vpack.c.b16 %v1073, %v1069
        %v1190 = vpack.c.b16 %v1074, %v1070
        %v1191 = vpack.c.b16 %v1075, %v1071
        %v1192 = vpack.c.b16 %v1076, %v1072
        %v1193 = vpack.c.b16 %v1081, %v1077
        %v1194 = vpack.c.b16 %v1082, %v1078
        %v1195 = vpack.c.b16 %v1083, %v1079
        %v1196 = vpack.c.b16 %v1084, %v1080
        %v1197 = vpack.c.b16 %v1089, %v1085
        %v1198 = vpack.c.b16 %v1090, %v1086
        %v1199 = vpack.c.b16 %v1091, %v1087
        %v1200 = vpack.c.b16 %v1092, %v1088
        %v1201 = vpack.c.b16 %v1097, %v1093
        %v1202 = vpack.c.b16 %v1098, %v1094
        %v1203 = vpack.c.b16 %v1099, %v1095
        %v1204 = vpack.c.b16 %v1100, %v1096
        %v1205 = vpack.c.b16 %v1105, %v1101
        %v1206 = vpack.c.b16 %v1106, %v1102
        %v1207 = vpack.c.b16 %v1107, %v1103
        %v1208 = vpack.c.b16 %v1108, %v1104
        %v1209 = vpack.c.b16 %v1113, %v1109
        %v1210 = vpack.c.b16 %v1114, %v1110
        %v1211 = vpack.c.b16 %v1115, %v1111
        %v1212 = vpack.c.b16 %v1116, %v1112
        %v1213 = vpack.c.b16 %v1121, %v1117
        %v1214 = vpack.c.b16 %v1122, %v1118
        %v1215 = vpack.c.b16 %v1123, %v1119
        %v1216 = vpack.c.b16 %v1124, %v1120
        %v1217 = vpack.c.b16 %v1129, %v1125
        %v1218 = vpack.c.b16 %v1130, %v1126
        %v1219 = vpack.c.b16 %v1131, %v1127
        %v1220 = vpack.c.b16 %v1132, %v1128
        %v1221 = vpack.c.b16 %v1137, %v1133
        %v1222 = vpack.c.b16 %v1138, %v1134
        %v1223 = vpack.c.b16 %v1139, %v1135
        %v1224 = vpack.c.b16 %v1140, %v1136
        %v1225 = vpack.c.b16 %v1145, %v1141
        %v1226 = vpack.c.b16 %v1146, %v1142
        %v1227 = vpack.c.b16 %v1147, %v1143
        %v1228 = vpack.c.b16 %v1148, %v1144
        %v1229 = vpack.c.b16 %v1153, %v1149
        %v1230 = vpack.c.b16 %v1154, %v1150
        %v1231 = vpack.c.b16 %v1155, %v1151
        %v1232 = vpack.c.b16 %v1156, %v1152
        %v1233 = vpack.c.b16 %v1161, %v1157
        %v1234 = vpack.c.b16 %v1162, %v1158
        %v1235 = vpack.c.b16 %v1163, %v1159
        %v1236 = vpack.c.b16 %v1164, %v1160
        %v1237 = vpack.c.b16 %v1169, %v1165
        %v1238 = vpack.c.b16 %v1170, %v1166
        %v1239 = vpack.c.b16 %v1171, %v1167
        %v1240 = vpack.c.b16 %v1172, %v1168
        %v1241 = vpack.c.b16 %v1177, %v1173
        %v1242 = vpack.c.b16 %v1178, %v1174
        %v1243 = vpack.c.b16 %v1179, %v1175
        %v1244 = vpack.c.b16 %v1180, %v1176
        %1309 = vmatprep.subr.bf16.mxu0 %v1210
        %1310 = vmatpush1.bf16.msra.mxu0 %v1209
        %1311 = vmatprep.subr.bf16.mxu0 %v1206
        %1312 = vmatpush1.bf16.msra.mxu0 %v1205
        %1313 = vmatprep.subr.bf16.mxu0 %v1202
        %1314 = vmatpush1.bf16.msra.mxu0 %v1201
        %1315 = vmatprep.subr.bf16.mxu0 %v1198
        %1316 = vmatpush1.bf16.msra.mxu0 %v1197
        %1317 = vmatprep.subr.bf16.mxu0 %v1194
        %1318 = vmatpush1.bf16.msra.mxu0 %v1193
        %1319 = vmatprep.subr.bf16.mxu0 %v1190
        %1320 = vmatpush1.bf16.msra.mxu0 %v1189
        %1321 = vmatprep.subr.bf16.mxu0 %v1186
        %1322 = vmatpush1.bf16.msra.mxu0 %v1185
        %1323 = vmatprep.subr.bf16.mxu0 %v1182
        %1324 = vmatpush1.bf16.msra.mxu0 %v1181
        %1325 = vmatprep.subr.bf16.mxu0 %v1242
        %1326 = vmatpush2.bf16.msra.mxu0 %v1241
        %1327 = vmatprep.subr.bf16.mxu0 %v1238
        %1328 = vmatpush2.bf16.msra.mxu0 %v1237
        %1329 = vmatprep.subr.bf16.mxu0 %v1234
        %1330 = vmatpush2.bf16.msra.mxu0 %v1233
        %1331 = vmatprep.subr.bf16.mxu0 %v1230
        %1332 = vmatpush2.bf16.msra.mxu0 %v1229
        %1333 = vmatprep.subr.bf16.mxu0 %v1226
        %1334 = vmatpush2.bf16.msra.mxu0 %v1225
        %1335 = vmatprep.subr.bf16.mxu0 %v1222
        %1336 = vmatpush2.bf16.msra.mxu0 %v1221
        %1337 = vmatprep.subr.bf16.mxu0 %v1218
        %1338 = vmatpush2.bf16.msra.mxu0 %v1217
        %1339 = vmatprep.subr.bf16.mxu0 %v1214
        %1340 = vmatpush2.bf16.msra.mxu0 %v1213
        %1341 = vmatprep.mubr.bf16.mxu0 %v958
        %1342 = vmatmul.mubr.bf16.gmra.mxu0 %v957
        %v1343 = vpop.f32.mrf.mxu0
        %v1344 = vadd.f32 %v892, %v1343
        %v1345 = vpop.f32.mrf.mxu0
        %v1346 = vadd.f32 %v896, %v1345
        %v1347 = vpop.f32.mrf.mxu0
        %v1348 = vadd.f32 %v892, %v1347
        %v1349 = vpop.f32.mrf.mxu0
        %v1350 = vadd.f32 %v896, %v1349
        %1351 = vmatprep.mubr.bf16.mxu0 %v960
        %1352 = vmatmul.mubr.bf16.gmra.mxu0 %v959
        %v1353 = vpop.f32.mrf.mxu0
        %v1354 = vadd.f32 %v892, %v1353
        %v1355 = vpop.f32.mrf.mxu0
        %v1356 = vadd.f32 %v896, %v1355
        %v1357 = vpop.f32.mrf.mxu0
        %v1358 = vadd.f32 %v892, %v1357
        %v1359 = vpop.f32.mrf.mxu0
        %v1360 = vadd.f32 %v896, %v1359
        %1361 = vmatprep.mubr.bf16.mxu0 %v962
        %1362 = vmatmul.mubr.bf16.gmra.mxu0 %v961
        %v1363 = vpop.f32.mrf.mxu0
        %v1364 = vadd.f32 %v892, %v1363
        %v1365 = vpop.f32.mrf.mxu0
        %v1366 = vadd.f32 %v896, %v1365
        %v1367 = vpop.f32.mrf.mxu0
        %v1368 = vadd.f32 %v892, %v1367
        %v1369 = vpop.f32.mrf.mxu0
        %v1370 = vadd.f32 %v896, %v1369
        %1371 = vmatprep.mubr.bf16.mxu0 %v964
        %1372 = vmatmul.mubr.bf16.gmra.mxu0 %v963
        %v1373 = vpop.f32.mrf.mxu0
        %v1374 = vadd.f32 %v892, %v1373
        %v1375 = vpop.f32.mrf.mxu0
        %v1376 = vadd.f32 %v896, %v1375
        %v1377 = vpop.f32.mrf.mxu0
        %v1378 = vadd.f32 %v892, %v1377
        %v1379 = vpop.f32.mrf.mxu0
        %v1380 = vadd.f32 %v896, %v1379
        %1381 = vmatprep.mubr.bf16.mxu0 %v966
        %1382 = vmatmul.mubr.bf16.gmra.mxu0 %v965
        %v1383 = vpop.f32.mrf.mxu0
        %v1384 = vadd.f32 %v892, %v1383
        %v1385 = vpop.f32.mrf.mxu0
        %v1386 = vadd.f32 %v896, %v1385
        %v1387 = vpop.f32.mrf.mxu0
        %v1388 = vadd.f32 %v892, %v1387
        %v1389 = vpop.f32.mrf.mxu0
        %v1390 = vadd.f32 %v896, %v1389
        %1391 = vmatprep.mubr.bf16.mxu0 %v968
        %1392 = vmatmul.mubr.bf16.gmra.mxu0 %v967
        %v1393 = vpop.f32.mrf.mxu0
        %v1394 = vadd.f32 %v892, %v1393
        %v1395 = vpop.f32.mrf.mxu0
        %v1396 = vadd.f32 %v896, %v1395
        %v1397 = vpop.f32.mrf.mxu0
        %v1398 = vadd.f32 %v892, %v1397
        %v1399 = vpop.f32.mrf.mxu0
        %v1400 = vadd.f32 %v896, %v1399
        %1401 = vmatprep.mubr.bf16.mxu0 %v970
        %1402 = vmatmul.mubr.bf16.gmra.mxu0 %v969
        %v1403 = vpop.f32.mrf.mxu0
        %v1404 = vadd.f32 %v892, %v1403
        %v1405 = vpop.f32.mrf.mxu0
        %v1406 = vadd.f32 %v896, %v1405
        %v1407 = vpop.f32.mrf.mxu0
        %v1408 = vadd.f32 %v892, %v1407
        %v1409 = vpop.f32.mrf.mxu0
        %v1410 = vadd.f32 %v896, %v1409
        %1411 = vmatprep.mubr.bf16.mxu0 %v972
        %1412 = vmatmul.mubr.bf16.gmra.mxu0 %v971
        %v1413 = vpop.f32.mrf.mxu0
        %v1414 = vadd.f32 %v892, %v1413
        %v1415 = vpop.f32.mrf.mxu0
        %v1416 = vadd.f32 %v896, %v1415
        %v1417 = vpop.f32.mrf.mxu0
        %v1418 = vadd.f32 %v892, %v1417
        %v1419 = vpop.f32.mrf.mxu0
        %v1420 = vadd.f32 %v896, %v1419
        %1421 = vdwg.mxu0
        %1422 = vmatprep.subr.bf16.mxu0 %v1212
        %1423 = vmatpush1.bf16.msra.mxu0 %v1211
        %1424 = vmatprep.subr.bf16.mxu0 %v1208
        %1425 = vmatpush1.bf16.msra.mxu0 %v1207
        %1426 = vmatprep.subr.bf16.mxu0 %v1204
        %1427 = vmatpush1.bf16.msra.mxu0 %v1203
        %1428 = vmatprep.subr.bf16.mxu0 %v1200
        %1429 = vmatpush1.bf16.msra.mxu0 %v1199
        %1430 = vmatprep.subr.bf16.mxu0 %v1196
        %1431 = vmatpush1.bf16.msra.mxu0 %v1195
        %1432 = vmatprep.subr.bf16.mxu0 %v1192
        %1433 = vmatpush1.bf16.msra.mxu0 %v1191
        %1434 = vmatprep.subr.bf16.mxu0 %v1188
        %1435 = vmatpush1.bf16.msra.mxu0 %v1187
        %1436 = vmatprep.subr.bf16.mxu0 %v1184
        %1437 = vmatpush1.bf16.msra.mxu0 %v1183
        %1438 = vmatprep.subr.bf16.mxu0 %v1244
        %1439 = vmatpush2.bf16.msra.mxu0 %v1243
        %1440 = vmatprep.subr.bf16.mxu0 %v1240
        %1441 = vmatpush2.bf16.msra.mxu0 %v1239
        %1442 = vmatprep.subr.bf16.mxu0 %v1236
        %1443 = vmatpush2.bf16.msra.mxu0 %v1235
        %1444 = vmatprep.subr.bf16.mxu0 %v1232
        %1445 = vmatpush2.bf16.msra.mxu0 %v1231
        %1446 = vmatprep.subr.bf16.mxu0 %v1228
        %1447 = vmatpush2.bf16.msra.mxu0 %v1227
        %1448 = vmatprep.subr.bf16.mxu0 %v1224
        %1449 = vmatpush2.bf16.msra.mxu0 %v1223
        %1450 = vmatprep.subr.bf16.mxu0 %v1220
        %1451 = vmatpush2.bf16.msra.mxu0 %v1219
        %1452 = vmatprep.subr.bf16.mxu0 %v1216
        %1453 = vmatpush2.bf16.msra.mxu0 %v1215
        %1454 = vmatprep.mubr.bf16.mxu0 %v958
        %1455 = vmatmul.mubr.bf16.gmra.mxu0 %v957
        %v1456 = vpop.f32.mrf.mxu0
        %v1457 = vadd.f32 %v900, %v1456
        %v1458 = vpop.f32.mrf.mxu0
        %v1459 = vadd.f32 %v904, %v1458
        %v1460 = vpop.f32.mrf.mxu0
        %v1461 = vadd.f32 %v900, %v1460
        %v1462 = vpop.f32.mrf.mxu0
        %v1463 = vadd.f32 %v904, %v1462
        %1464 = vmatprep.mubr.bf16.mxu0 %v960
        %1465 = vmatmul.mubr.bf16.gmra.mxu0 %v959
        %v1466 = vpop.f32.mrf.mxu0
        %v1467 = vadd.f32 %v900, %v1466
        %v1468 = vpop.f32.mrf.mxu0
        %v1469 = vadd.f32 %v904, %v1468
        %v1470 = vpop.f32.mrf.mxu0
        %v1471 = vadd.f32 %v900, %v1470
        %v1472 = vpop.f32.mrf.mxu0
        %v1473 = vadd.f32 %v904, %v1472
        %1474 = vmatprep.mubr.bf16.mxu0 %v962
        %1475 = vmatmul.mubr.bf16.gmra.mxu0 %v961
        %v1476 = vpop.f32.mrf.mxu0
        %v1477 = vadd.f32 %v900, %v1476
        %v1478 = vpop.f32.mrf.mxu0
        %v1479 = vadd.f32 %v904, %v1478
        %v1480 = vpop.f32.mrf.mxu0
        %v1481 = vadd.f32 %v900, %v1480
        %v1482 = vpop.f32.mrf.mxu0
        %v1483 = vadd.f32 %v904, %v1482
        %1484 = vmatprep.mubr.bf16.mxu0 %v964
        %1485 = vmatmul.mubr.bf16.gmra.mxu0 %v963
        %v1486 = vpop.f32.mrf.mxu0
        %v1487 = vadd.f32 %v900, %v1486
        %v1488 = vpop.f32.mrf.mxu0
        %v1489 = vadd.f32 %v904, %v1488
        %v1490 = vpop.f32.mrf.mxu0
        %v1491 = vadd.f32 %v900, %v1490
        %v1492 = vpop.f32.mrf.mxu0
        %v1493 = vadd.f32 %v904, %v1492
        %1494 = vmatprep.mubr.bf16.mxu0 %v966
        %1495 = vmatmul.mubr.bf16.gmra.mxu0 %v965
        %v1496 = vpop.f32.mrf.mxu0
        %v1497 = vadd.f32 %v900, %v1496
        %v1498 = vpop.f32.mrf.mxu0
        %v1499 = vadd.f32 %v904, %v1498
        %v1500 = vpop.f32.mrf.mxu0
        %v1501 = vadd.f32 %v900, %v1500
        %v1502 = vpop.f32.mrf.mxu0
        %v1503 = vadd.f32 %v904, %v1502
        %1504 = vmatprep.mubr.bf16.mxu0 %v968
        %1505 = vmatmul.mubr.bf16.gmra.mxu0 %v967
        %v1506 = vpop.f32.mrf.mxu0
        %v1507 = vadd.f32 %v900, %v1506
        %v1508 = vpop.f32.mrf.mxu0
        %v1509 = vadd.f32 %v904, %v1508
        %v1510 = vpop.f32.mrf.mxu0
        %v1511 = vadd.f32 %v900, %v1510
        %v1512 = vpop.f32.mrf.mxu0
        %v1513 = vadd.f32 %v904, %v1512
        %1514 = vmatprep.mubr.bf16.mxu0 %v970
        %1515 = vmatmul.mubr.bf16.gmra.mxu0 %v969
        %v1516 = vpop.f32.mrf.mxu0
        %v1517 = vadd.f32 %v900, %v1516
        %v1518 = vpop.f32.mrf.mxu0
        %v1519 = vadd.f32 %v904, %v1518
        %v1520 = vpop.f32.mrf.mxu0
        %v1521 = vadd.f32 %v900, %v1520
        %v1522 = vpop.f32.mrf.mxu0
        %v1523 = vadd.f32 %v904, %v1522
        %1524 = vmatprep.mubr.bf16.mxu0 %v972
        %1525 = vmatmul.mubr.bf16.gmra.mxu0 %v971
        %v1526 = vpop.f32.mrf.mxu0
        %v1527 = vadd.f32 %v900, %v1526
        %v1528 = vpop.f32.mrf.mxu0
        %v1529 = vadd.f32 %v904, %v1528
        %v1530 = vpop.f32.mrf.mxu0
        %v1531 = vadd.f32 %v900, %v1530
        %v1532 = vpop.f32.mrf.mxu0
        %v1533 = vadd.f32 %v904, %v1532
        %1534 = vdwg.mxu0
        %v1535 = vpack.c.bf16 %v749, %v745
        %v1536 = vpack.c.bf16 %v751, %v747
        %v1537 = vpack.c.bf16 %v759, %v755
        %v1538 = vpack.c.bf16 %v761, %v757
        %v1539 = vpack.c.bf16 %v769, %v765
        %v1540 = vpack.c.bf16 %v771, %v767
        %v1541 = vpack.c.bf16 %v779, %v775
        %v1542 = vpack.c.bf16 %v781, %v777
        %v1543 = vpack.c.bf16 %v789, %v785
        %v1544 = vpack.c.bf16 %v791, %v787
        %v1545 = vpack.c.bf16 %v799, %v795
        %v1546 = vpack.c.bf16 %v801, %v797
        %v1547 = vpack.c.bf16 %v809, %v805
        %v1548 = vpack.c.bf16 %v811, %v807
        %v1549 = vpack.c.bf16 %v819, %v815
        %v1550 = vpack.c.bf16 %v821, %v817
        %v1551 = vpack.c.bf16 %v1348, %v1344
        %v1552 = vpack.c.bf16 %v1350, %v1346
        %v1553 = vpack.c.bf16 %v1358, %v1354
        %v1554 = vpack.c.bf16 %v1360, %v1356
        %v1555 = vpack.c.bf16 %v1368, %v1364
        %v1556 = vpack.c.bf16 %v1370, %v1366
        %v1557 = vpack.c.bf16 %v1378, %v1374
        %v1558 = vpack.c.bf16 %v1380, %v1376
        %v1559 = vpack.c.bf16 %v1388, %v1384
        %v1560 = vpack.c.bf16 %v1390, %v1386
        %v1561 = vpack.c.bf16 %v1398, %v1394
        %v1562 = vpack.c.bf16 %v1400, %v1396
        %v1563 = vpack.c.bf16 %v1408, %v1404
        %v1564 = vpack.c.bf16 %v1410, %v1406
        %v1565 = vpack.c.bf16 %v1418, %v1414
        %v1566 = vpack.c.bf16 %v1420, %v1416
        %v1567 = vpack.c.bf16 %v1461, %v1457
        %v1568 = vpack.c.bf16 %v1463, %v1459
        %v1569 = vpack.c.bf16 %v1471, %v1467
        %v1570 = vpack.c.bf16 %v1473, %v1469
        %v1571 = vpack.c.bf16 %v1481, %v1477
        %v1572 = vpack.c.bf16 %v1483, %v1479
        %v1573 = vpack.c.bf16 %v1491, %v1487
        %v1574 = vpack.c.bf16 %v1493, %v1489
        %v1575 = vpack.c.bf16 %v1501, %v1497
        %v1576 = vpack.c.bf16 %v1503, %v1499
        %v1577 = vpack.c.bf16 %v1511, %v1507
        %v1578 = vpack.c.bf16 %v1513, %v1509
        %v1579 = vpack.c.bf16 %v1521, %v1517
        %v1580 = vpack.c.bf16 %v1523, %v1519
        %v1581 = vpack.c.bf16 %v1531, %v1527
        %v1582 = vpack.c.bf16 %v1533, %v1529
        %v1584 = vlaneseq
        %v1585 = vshrl.u32 %v1584, 7
        %v1586 = vsub.s32 0, %v1585
        %v1587 = vrot.slane %v425, %v1586
        %1589 = vmatprep.subr.bf16.mxu0 0
        %1590 = vmatpush1.bf16.xpose.msra.mxu0 %v1565
        %1591 = vmatprep.subr.bf16.mxu0 0
        %1592 = vmatpush1.bf16.xpose.msra.mxu0 %v1563
        %1593 = vmatprep.subr.bf16.mxu0 0
        %1594 = vmatpush1.bf16.xpose.msra.mxu0 %v1561
        %1595 = vmatprep.subr.bf16.mxu0 0
        %1596 = vmatpush1.bf16.xpose.msra.mxu0 %v1559
        %1597 = vmatprep.subr.bf16.mxu0 0
        %1598 = vmatpush1.bf16.xpose.msra.mxu0 %v1557
        %1599 = vmatprep.subr.bf16.mxu0 0
        %1600 = vmatpush1.bf16.xpose.msra.mxu0 %v1555
        %1601 = vmatprep.subr.bf16.mxu0 0
        %1602 = vmatpush1.bf16.xpose.msra.mxu0 %v1553
        %1603 = vmatprep.subr.bf16.mxu0 0
        %1604 = vmatpush1.bf16.xpose.msra.mxu0 %v1551
        %1605 = vmatprep.subr.bf16.mxu0 0
        %1606 = vmatpush2.bf16.xpose.msra.mxu0 0
        %1607 = vmatprep.subr.bf16.mxu0 0
        %1608 = vmatpush2.bf16.xpose.msra.mxu0 0
        %1609 = vmatprep.subr.bf16.mxu0 0
        %1610 = vmatpush2.bf16.xpose.msra.mxu0 0
        %1611 = vmatprep.subr.bf16.mxu0 0
        %1612 = vmatpush2.bf16.xpose.msra.mxu0 0
        %1613 = vmatprep.subr.bf16.mxu0 0
        %1614 = vmatpush2.bf16.xpose.msra.mxu0 0
        %1615 = vmatprep.subr.bf16.mxu0 0
        %1616 = vmatpush2.bf16.xpose.msra.mxu0 0
        %1617 = vmatprep.subr.bf16.mxu0 0
        %1618 = vmatpush2.bf16.xpose.msra.mxu0 0
        %1619 = vmatprep.subr.bf16.mxu0 0
        %1620 = vmatpush2.bf16.xpose.msra.mxu0 0
        %1621 = vmatprep.mubr.bf16.mxu0 0
        %1622 = vmatmul.mubr.bf16.gmra.mxu0 %v1535
        %v1623 = vpop.f32.mrf.mxu0
        %v1624 = vadd.f32 %v1587, %v1623
        %v1625 = vpop.f32.mrf.mxu0
        %v1626 = vpop.f32.mrf.mxu0
        %v1627 = vadd.f32 %v1587, %v1626
        %v1628 = vpop.f32.mrf.mxu0
        %1629 = vmatprep.mubr.bf16.mxu0 0
        %1630 = vmatmul.mubr.bf16.gmra.mxu0 %v1537
        %v1631 = vpop.f32.mrf.mxu0
        %v1632 = vadd.f32 %v1587, %v1631
        %v1633 = vpop.f32.mrf.mxu0
        %v1634 = vpop.f32.mrf.mxu0
        %v1635 = vadd.f32 %v1587, %v1634
        %v1636 = vpop.f32.mrf.mxu0
        %1637 = vmatprep.mubr.bf16.mxu0 0
        %1638 = vmatmul.mubr.bf16.gmra.mxu0 %v1539
        %v1639 = vpop.f32.mrf.mxu0
        %v1640 = vadd.f32 %v1587, %v1639
        %v1641 = vpop.f32.mrf.mxu0
        %v1642 = vpop.f32.mrf.mxu0
        %v1643 = vadd.f32 %v1587, %v1642
        %v1644 = vpop.f32.mrf.mxu0
        %1645 = vmatprep.mubr.bf16.mxu0 0
        %1646 = vmatmul.mubr.bf16.gmra.mxu0 %v1541
        %v1647 = vpop.f32.mrf.mxu0
        %v1648 = vadd.f32 %v1587, %v1647
        %v1649 = vpop.f32.mrf.mxu0
        %v1650 = vpop.f32.mrf.mxu0
        %v1651 = vadd.f32 %v1587, %v1650
        %v1652 = vpop.f32.mrf.mxu0
        %1653 = vmatprep.mubr.bf16.mxu0 0
        %1654 = vmatmul.mubr.bf16.gmra.mxu0 %v1543
        %v1655 = vpop.f32.mrf.mxu0
        %v1656 = vadd.f32 %v1587, %v1655
        %v1657 = vpop.f32.mrf.mxu0
        %v1658 = vpop.f32.mrf.mxu0
        %v1659 = vadd.f32 %v1587, %v1658
        %v1660 = vpop.f32.mrf.mxu0
        %1661 = vmatprep.mubr.bf16.mxu0 0
        %1662 = vmatmul.mubr.bf16.gmra.mxu0 %v1545
        %v1663 = vpop.f32.mrf.mxu0
        %v1664 = vadd.f32 %v1587, %v1663
        %v1665 = vpop.f32.mrf.mxu0
        %v1666 = vpop.f32.mrf.mxu0
        %v1667 = vadd.f32 %v1587, %v1666
        %v1668 = vpop.f32.mrf.mxu0
        %1669 = vmatprep.mubr.bf16.mxu0 0
        %1670 = vmatmul.mubr.bf16.gmra.mxu0 %v1547
        %v1671 = vpop.f32.mrf.mxu0
        %v1672 = vadd.f32 %v1587, %v1671
        %v1673 = vpop.f32.mrf.mxu0
        %v1674 = vpop.f32.mrf.mxu0
        %v1675 = vadd.f32 %v1587, %v1674
        %v1676 = vpop.f32.mrf.mxu0
        %1677 = vmatprep.mubr.bf16.mxu0 0
        %1678 = vmatmul.mubr.bf16.gmra.mxu0 %v1549
        %v1679 = vpop.f32.mrf.mxu0
        %v1680 = vadd.f32 %v1587, %v1679
        %v1681 = vpop.f32.mrf.mxu0
        %v1682 = vpop.f32.mrf.mxu0
        %v1683 = vadd.f32 %v1587, %v1682
        %v1684 = vpop.f32.mrf.mxu0
        %1685 = vdwg.mxu0
        %1686 = vmax.xlane.f32.xlu0 %v1624
        %v1687 = vpop.xlane.xlu0 %1686
        %1688 = vmax.xlane.f32.xlu0 %v1627
        %v1689 = vpop.xlane.xlu0 %1688
        %1690 = vmax.xlane.f32.xlu0 %v1632
        %v1691 = vpop.xlane.xlu0 %1690
        %1692 = vmax.xlane.f32.xlu0 %v1635
        %v1693 = vpop.xlane.xlu0 %1692
        %1694 = vmax.xlane.f32.xlu0 %v1640
        %v1695 = vpop.xlane.xlu0 %1694
        %1696 = vmax.xlane.f32.xlu0 %v1643
        %v1697 = vpop.xlane.xlu0 %1696
        %1698 = vmax.xlane.f32.xlu0 %v1648
        %v1699 = vpop.xlane.xlu0 %1698
        %1700 = vmax.xlane.f32.xlu0 %v1651
        %v1701 = vpop.xlane.xlu0 %1700
        %1702 = vmax.xlane.f32.xlu0 %v1656
        %v1703 = vpop.xlane.xlu0 %1702
        %1704 = vmax.xlane.f32.xlu0 %v1659
        %v1705 = vpop.xlane.xlu0 %1704
        %1706 = vmax.xlane.f32.xlu0 %v1664
        %v1707 = vpop.xlane.xlu0 %1706
        %1708 = vmax.xlane.f32.xlu0 %v1667
        %v1709 = vpop.xlane.xlu0 %1708
        %1710 = vmax.xlane.f32.xlu0 %v1672
        %v1711 = vpop.xlane.xlu0 %1710
        %1712 = vmax.xlane.f32.xlu0 %v1675
        %v1713 = vpop.xlane.xlu0 %1712
        %1714 = vmax.xlane.f32.xlu0 %v1680
        %v1715 = vpop.xlane.xlu0 %1714
        %1716 = vmax.xlane.f32.xlu0 %v1683
        %v1717 = vpop.xlane.xlu0 %1716
        %v1718 = vsub.f32 %v1624, %v1687
        %v1719 = vsub.f32 %v1627, %v1689
        %v1720 = vsub.f32 %v1632, %v1691
        %v1721 = vsub.f32 %v1635, %v1693
        %v1722 = vsub.f32 %v1640, %v1695
        %v1723 = vsub.f32 %v1643, %v1697
        %v1724 = vsub.f32 %v1648, %v1699
        %v1725 = vsub.f32 %v1651, %v1701
        %v1726 = vsub.f32 %v1656, %v1703
        %v1727 = vsub.f32 %v1659, %v1705
        %v1728 = vsub.f32 %v1664, %v1707
        %v1729 = vsub.f32 %v1667, %v1709
        %v1730 = vsub.f32 %v1672, %v1711
        %v1731 = vsub.f32 %v1675, %v1713
        %v1732 = vsub.f32 %v1680, %v1715
        %v1733 = vsub.f32 %v1683, %v1717
        %v1734 = vmul.f32 %v1718, 1.442695
        %v1735 = vpow.pop %v1734
        %v1736 = vmul.f32 %v1719, 1.442695
        %v1737 = vpow.pop %v1736
        %v1738 = vmul.f32 %v1720, 1.442695
        %v1739 = vpow.pop %v1738
        %v1740 = vmul.f32 %v1721, 1.442695
        %v1741 = vpow.pop %v1740
        %v1742 = vmul.f32 %v1722, 1.442695
        %v1743 = vpow.pop %v1742
        %v1744 = vmul.f32 %v1723, 1.442695
        %v1745 = vpow.pop %v1744
        %v1746 = vmul.f32 %v1724, 1.442695
        %v1747 = vpow.pop %v1746
        %v1748 = vmul.f32 %v1725, 1.442695
        %v1749 = vpow.pop %v1748
        %v1750 = vmul.f32 %v1726, 1.442695
        %v1751 = vpow.pop %v1750
        %v1752 = vmul.f32 %v1727, 1.442695
        %v1753 = vpow.pop %v1752
        %v1754 = vmul.f32 %v1728, 1.442695
        %v1755 = vpow.pop %v1754
        %v1756 = vmul.f32 %v1729, 1.442695
        %v1757 = vpow.pop %v1756
        %v1758 = vmul.f32 %v1730, 1.442695
        %v1759 = vpow.pop %v1758
        %v1760 = vmul.f32 %v1731, 1.442695
        %v1761 = vpow.pop %v1760
        %v1762 = vmul.f32 %v1732, 1.442695
        %v1763 = vpow.pop %v1762
        %v1764 = vmul.f32 %v1733, 1.442695
        %v1765 = vpow.pop %v1764
        %1766 = vadd.xlane.f32.xlu0 %v1735
        %v1767 = vpop.xlane.xlu0 %1766
        %1768 = vadd.xlane.f32.xlu0 %v1737
        %v1769 = vpop.xlane.xlu0 %1768
        %1770 = vadd.xlane.f32.xlu0 %v1739
        %v1771 = vpop.xlane.xlu0 %1770
        %1772 = vadd.xlane.f32.xlu0 %v1741
        %v1773 = vpop.xlane.xlu0 %1772
        %1774 = vadd.xlane.f32.xlu0 %v1743
        %v1775 = vpop.xlane.xlu0 %1774
        %1776 = vadd.xlane.f32.xlu0 %v1745
        %v1777 = vpop.xlane.xlu0 %1776
        %1778 = vadd.xlane.f32.xlu0 %v1747
        %v1779 = vpop.xlane.xlu0 %1778
        %1780 = vadd.xlane.f32.xlu0 %v1749
        %v1781 = vpop.xlane.xlu0 %1780
        %1782 = vadd.xlane.f32.xlu0 %v1751
        %v1783 = vpop.xlane.xlu0 %1782
        %1784 = vadd.xlane.f32.xlu0 %v1753
        %v1785 = vpop.xlane.xlu0 %1784
        %1786 = vadd.xlane.f32.xlu0 %v1755
        %v1787 = vpop.xlane.xlu0 %1786
        %1788 = vadd.xlane.f32.xlu0 %v1757
        %v1789 = vpop.xlane.xlu0 %1788
        %1790 = vadd.xlane.f32.xlu0 %v1759
        %v1791 = vpop.xlane.xlu0 %1790
        %1792 = vadd.xlane.f32.xlu0 %v1761
        %v1793 = vpop.xlane.xlu0 %1792
        %1794 = vadd.xlane.f32.xlu0 %v1763
        %v1795 = vpop.xlane.xlu0 %1794
        %1796 = vadd.xlane.f32.xlu0 %v1765
        %v1797 = vpop.xlane.xlu0 %1796
        %v1798 = vrcp.pop %v1767
        %v1799 = vrcp.pop %v1769
        %v1800 = vrcp.pop %v1771
        %v1801 = vrcp.pop %v1773
        %v1802 = vrcp.pop %v1775
        %v1803 = vrcp.pop %v1777
        %v1804 = vrcp.pop %v1779
        %v1805 = vrcp.pop %v1781
        %v1806 = vrcp.pop %v1783
        %v1807 = vrcp.pop %v1785
        %v1808 = vrcp.pop %v1787
        %v1809 = vrcp.pop %v1789
        %v1810 = vrcp.pop %v1791
        %v1811 = vrcp.pop %v1793
        %v1812 = vrcp.pop %v1795
        %v1813 = vrcp.pop %v1797
        %v1814 = vmul.f32 %v1735, %v1798
        %v1815 = vmul.f32 %v1737, %v1799
        %v1816 = vmul.f32 %v1739, %v1800
        %v1817 = vmul.f32 %v1741, %v1801
        %v1818 = vmul.f32 %v1743, %v1802
        %v1819 = vmul.f32 %v1745, %v1803
        %v1820 = vmul.f32 %v1747, %v1804
        %v1821 = vmul.f32 %v1749, %v1805
        %v1822 = vmul.f32 %v1751, %v1806
        %v1823 = vmul.f32 %v1753, %v1807
        %v1824 = vmul.f32 %v1755, %v1808
        %v1825 = vmul.f32 %v1757, %v1809
        %v1826 = vmul.f32 %v1759, %v1810
        %v1827 = vmul.f32 %v1761, %v1811
        %v1828 = vmul.f32 %v1763, %v1812
        %v1829 = vmul.f32 %v1765, %v1813
        %v1830 = vpack.c.bf16 %v1815, %v1814
        %v1831 = vpack.c.bf16 %v1817, %v1816
        %v1832 = vpack.c.bf16 %v1819, %v1818
        %v1833 = vpack.c.bf16 %v1821, %v1820
        %v1834 = vpack.c.bf16 %v1823, %v1822
        %v1835 = vpack.c.bf16 %v1825, %v1824
        %v1836 = vpack.c.bf16 %v1827, %v1826
        %v1837 = vpack.c.bf16 %v1829, %v1828
        %1838 = vmatprep.subr.bf16.mxu0 0
        %1839 = vmatpush1.bf16.msra.mxu0 %v1581
        %1840 = vmatprep.subr.bf16.mxu0 0
        %1841 = vmatpush1.bf16.msra.mxu0 %v1579
        %1842 = vmatprep.subr.bf16.mxu0 0
        %1843 = vmatpush1.bf16.msra.mxu0 %v1577
        %1844 = vmatprep.subr.bf16.mxu0 0
        %1845 = vmatpush1.bf16.msra.mxu0 %v1575
        %1846 = vmatprep.subr.bf16.mxu0 0
        %1847 = vmatpush1.bf16.msra.mxu0 %v1573
        %1848 = vmatprep.subr.bf16.mxu0 0
        %1849 = vmatpush1.bf16.msra.mxu0 %v1571
        %1850 = vmatprep.subr.bf16.mxu0 0
        %1851 = vmatpush1.bf16.msra.mxu0 %v1569
        %1852 = vmatprep.subr.bf16.mxu0 0
        %1853 = vmatpush1.bf16.msra.mxu0 %v1567
        %1854 = vmatprep.subr.bf16.mxu0 0
        %1855 = vmatpush2.bf16.msra.mxu0 0
        %1856 = vmatprep.subr.bf16.mxu0 0
        %1857 = vmatpush2.bf16.msra.mxu0 0
        %1858 = vmatprep.subr.bf16.mxu0 0
        %1859 = vmatpush2.bf16.msra.mxu0 0
        %1860 = vmatprep.subr.bf16.mxu0 0
        %1861 = vmatpush2.bf16.msra.mxu0 0
        %1862 = vmatprep.subr.bf16.mxu0 0
        %1863 = vmatpush2.bf16.msra.mxu0 0
        %1864 = vmatprep.subr.bf16.mxu0 0
        %1865 = vmatpush2.bf16.msra.mxu0 0
        %1866 = vmatprep.subr.bf16.mxu0 0
        %1867 = vmatpush2.bf16.msra.mxu0 0
        %1868 = vmatprep.subr.bf16.mxu0 0
        %1869 = vmatpush2.bf16.msra.mxu0 0
        %1870 = vmatprep.mubr.bf16.mxu0 0
        %1871 = vmatmul.mubr.bf16.gmra.mxu0 %v1830
        %v1872 = vpop.f32.mrf.mxu0
        %v1873 = vadd.f32 0.0, %v1872
        %v1874 = vpop.f32.mrf.mxu0
        %v1875 = vpop.f32.mrf.mxu0
        %v1876 = vadd.f32 0.0, %v1875
        %v1877 = vpop.f32.mrf.mxu0
        %1878 = vmatprep.mubr.bf16.mxu0 0
        %1879 = vmatmul.mubr.bf16.gmra.mxu0 %v1831
        %v1880 = vpop.f32.mrf.mxu0
        %v1881 = vadd.f32 0.0, %v1880
        %v1882 = vpop.f32.mrf.mxu0
        %v1883 = vpop.f32.mrf.mxu0
        %v1884 = vadd.f32 0.0, %v1883
        %v1885 = vpop.f32.mrf.mxu0
        %1886 = vmatprep.mubr.bf16.mxu0 0
        %1887 = vmatmul.mubr.bf16.gmra.mxu0 %v1832
        %v1888 = vpop.f32.mrf.mxu0
        %v1889 = vadd.f32 0.0, %v1888
        %v1890 = vpop.f32.mrf.mxu0
        %v1891 = vpop.f32.mrf.mxu0
        %v1892 = vadd.f32 0.0, %v1891
        %v1893 = vpop.f32.mrf.mxu0
        %1894 = vmatprep.mubr.bf16.mxu0 0
        %1895 = vmatmul.mubr.bf16.gmra.mxu0 %v1833
        %v1896 = vpop.f32.mrf.mxu0
        %v1897 = vadd.f32 0.0, %v1896
        %v1898 = vpop.f32.mrf.mxu0
        %v1899 = vpop.f32.mrf.mxu0
        %v1900 = vadd.f32 0.0, %v1899
        %v1901 = vpop.f32.mrf.mxu0
        %1902 = vmatprep.mubr.bf16.mxu0 0
        %1903 = vmatmul.mubr.bf16.gmra.mxu0 %v1834
        %v1904 = vpop.f32.mrf.mxu0
        %v1905 = vadd.f32 0.0, %v1904
        %v1906 = vpop.f32.mrf.mxu0
        %v1907 = vpop.f32.mrf.mxu0
        %v1908 = vadd.f32 0.0, %v1907
        %v1909 = vpop.f32.mrf.mxu0
        %1910 = vmatprep.mubr.bf16.mxu0 0
        %1911 = vmatmul.mubr.bf16.gmra.mxu0 %v1835
        %v1912 = vpop.f32.mrf.mxu0
        %v1913 = vadd.f32 0.0, %v1912
        %v1914 = vpop.f32.mrf.mxu0
        %v1915 = vpop.f32.mrf.mxu0
        %v1916 = vadd.f32 0.0, %v1915
        %v1917 = vpop.f32.mrf.mxu0
        %1918 = vmatprep.mubr.bf16.mxu0 0
        %1919 = vmatmul.mubr.bf16.gmra.mxu0 %v1836
        %v1920 = vpop.f32.mrf.mxu0
        %v1921 = vadd.f32 0.0, %v1920
        %v1922 = vpop.f32.mrf.mxu0
        %v1923 = vpop.f32.mrf.mxu0
        %v1924 = vadd.f32 0.0, %v1923
        %v1925 = vpop.f32.mrf.mxu0
        %1926 = vmatprep.mubr.bf16.mxu0 0
        %1927 = vmatmul.mubr.bf16.gmra.mxu0 %v1837
        %v1928 = vpop.f32.mrf.mxu0
        %v1929 = vadd.f32 0.0, %v1928
        %v1930 = vpop.f32.mrf.mxu0
        %v1931 = vpop.f32.mrf.mxu0
        %v1932 = vadd.f32 0.0, %v1931
        %v1933 = vpop.f32.mrf.mxu0
        %1934 = vdwg.mxu0
        %1935 = vst [vmem:[%s388] sm:$0xff] %v1873
        %1936 = vst [vmem:[%s388 + $0x10] sm:$0xff] %v1876
        %1937 = vst [vmem:[%s388 + $0x20] sm:$0xff] %v1881
        %1938 = vst [vmem:[%s388 + $0x30] sm:$0xff] %v1884
        %1939 = vst [vmem:[%s388 + $0x40] sm:$0xff] %v1889
        %1940 = vst [vmem:[%s388 + $0x50] sm:$0xff] %v1892
        %1941 = vst [vmem:[%s388 + $0x60] sm:$0xff] %v1897
        %1942 = vst [vmem:[%s388 + $0x70] sm:$0xff] %v1900
        %1943 = vst [vmem:[%s388 + $0x80] sm:$0xff] %v1905
        %1944 = vst [vmem:[%s388 + $0x90] sm:$0xff] %v1908
        %1945 = vst [vmem:[%s388 + $0xa0] sm:$0xff] %v1913
        %1946 = vst [vmem:[%s388 + $0xb0] sm:$0xff] %v1916
        %1947 = vst [vmem:[%s388 + $0xc0] sm:$0xff] %v1921
        %1948 = vst [vmem:[%s388 + $0xd0] sm:$0xff] %v1924
        %1949 = vst [vmem:[%s388 + $0xe0] sm:$0xff] %v1929
        %1950 = vst [vmem:[%s388 + $0xf0] sm:$0xff] %v1932
        %1951 = vmatprep.subr.bf16.mxu0 0
        %1952 = vmatpush1.bf16.xpose.msra.mxu0 %v1566
        %1953 = vmatprep.subr.bf16.mxu0 0
        %1954 = vmatpush1.bf16.xpose.msra.mxu0 %v1564
        %1955 = vmatprep.subr.bf16.mxu0 0
        %1956 = vmatpush1.bf16.xpose.msra.mxu0 %v1562
        %1957 = vmatprep.subr.bf16.mxu0 0
        %1958 = vmatpush1.bf16.xpose.msra.mxu0 %v1560
        %1959 = vmatprep.subr.bf16.mxu0 0
        %1960 = vmatpush1.bf16.xpose.msra.mxu0 %v1558
        %1961 = vmatprep.subr.bf16.mxu0 0
        %1962 = vmatpush1.bf16.xpose.msra.mxu0 %v1556
        %1963 = vmatprep.subr.bf16.mxu0 0
        %1964 = vmatpush1.bf16.xpose.msra.mxu0 %v1554
        %1965 = vmatprep.subr.bf16.mxu0 0
        %1966 = vmatpush1.bf16.xpose.msra.mxu0 %v1552
        %1967 = vmatprep.subr.bf16.mxu0 0
        %1968 = vmatpush2.bf16.xpose.msra.mxu0 0
        %1969 = vmatprep.subr.bf16.mxu0 0
        %1970 = vmatpush2.bf16.xpose.msra.mxu0 0
        %1971 = vmatprep.subr.bf16.mxu0 0
        %1972 = vmatpush2.bf16.xpose.msra.mxu0 0
        %1973 = vmatprep.subr.bf16.mxu0 0
        %1974 = vmatpush2.bf16.xpose.msra.mxu0 0
        %1975 = vmatprep.subr.bf16.mxu0 0
        %1976 = vmatpush2.bf16.xpose.msra.mxu0 0
        %1977 = vmatprep.subr.bf16.mxu0 0
        %1978 = vmatpush2.bf16.xpose.msra.mxu0 0
        %1979 = vmatprep.subr.bf16.mxu0 0
        %1980 = vmatpush2.bf16.xpose.msra.mxu0 0
        %1981 = vmatprep.subr.bf16.mxu0 0
        %1982 = vmatpush2.bf16.xpose.msra.mxu0 0
        %1983 = vmatprep.mubr.bf16.mxu0 0
        %1984 = vmatmul.mubr.bf16.gmra.mxu0 %v1536
        %v1985 = vpop.f32.mrf.mxu0
        %v1986 = vadd.f32 %v1587, %v1985
        %v1987 = vpop.f32.mrf.mxu0
        %v1988 = vpop.f32.mrf.mxu0
        %v1989 = vadd.f32 %v1587, %v1988
        %v1990 = vpop.f32.mrf.mxu0
        %1991 = vmatprep.mubr.bf16.mxu0 0
        %1992 = vmatmul.mubr.bf16.gmra.mxu0 %v1538
        %v1993 = vpop.f32.mrf.mxu0
        %v1994 = vadd.f32 %v1587, %v1993
        %v1995 = vpop.f32.mrf.mxu0
        %v1996 = vpop.f32.mrf.mxu0
        %v1997 = vadd.f32 %v1587, %v1996
        %v1998 = vpop.f32.mrf.mxu0
        %1999 = vmatprep.mubr.bf16.mxu0 0
        %2000 = vmatmul.mubr.bf16.gmra.mxu0 %v1540
        %v2001 = vpop.f32.mrf.mxu0
        %v2002 = vadd.f32 %v1587, %v2001
        %v2003 = vpop.f32.mrf.mxu0
        %v2004 = vpop.f32.mrf.mxu0
        %v2005 = vadd.f32 %v1587, %v2004
        %v2006 = vpop.f32.mrf.mxu0
        %2007 = vmatprep.mubr.bf16.mxu0 0
        %2008 = vmatmul.mubr.bf16.gmra.mxu0 %v1542
        %v2009 = vpop.f32.mrf.mxu0
        %v2010 = vadd.f32 %v1587, %v2009
        %v2011 = vpop.f32.mrf.mxu0
        %v2012 = vpop.f32.mrf.mxu0
        %v2013 = vadd.f32 %v1587, %v2012
        %v2014 = vpop.f32.mrf.mxu0
        %2015 = vmatprep.mubr.bf16.mxu0 0
        %2016 = vmatmul.mubr.bf16.gmra.mxu0 %v1544
        %v2017 = vpop.f32.mrf.mxu0
        %v2018 = vadd.f32 %v1587, %v2017
        %v2019 = vpop.f32.mrf.mxu0
        %v2020 = vpop.f32.mrf.mxu0
        %v2021 = vadd.f32 %v1587, %v2020
        %v2022 = vpop.f32.mrf.mxu0
        %2023 = vmatprep.mubr.bf16.mxu0 0
        %2024 = vmatmul.mubr.bf16.gmra.mxu0 %v1546
        %v2025 = vpop.f32.mrf.mxu0
        %v2026 = vadd.f32 %v1587, %v2025
        %v2027 = vpop.f32.mrf.mxu0
        %v2028 = vpop.f32.mrf.mxu0
        %v2029 = vadd.f32 %v1587, %v2028
        %v2030 = vpop.f32.mrf.mxu0
        %2031 = vmatprep.mubr.bf16.mxu0 0
        %2032 = vmatmul.mubr.bf16.gmra.mxu0 %v1548
        %v2033 = vpop.f32.mrf.mxu0
        %v2034 = vadd.f32 %v1587, %v2033
        %v2035 = vpop.f32.mrf.mxu0
        %v2036 = vpop.f32.mrf.mxu0
        %v2037 = vadd.f32 %v1587, %v2036
        %v2038 = vpop.f32.mrf.mxu0
        %2039 = vmatprep.mubr.bf16.mxu0 0
        %2040 = vmatmul.mubr.bf16.gmra.mxu0 %v1550
        %v2041 = vpop.f32.mrf.mxu0
        %v2042 = vadd.f32 %v1587, %v2041
        %v2043 = vpop.f32.mrf.mxu0
        %v2044 = vpop.f32.mrf.mxu0
        %v2045 = vadd.f32 %v1587, %v2044
        %v2046 = vpop.f32.mrf.mxu0
        %2047 = vdwg.mxu0
        %2048 = vmax.xlane.f32.xlu0 %v1986
        %v2049 = vpop.xlane.xlu0 %2048
        %2050 = vmax.xlane.f32.xlu0 %v1989
        %v2051 = vpop.xlane.xlu0 %2050
        %2052 = vmax.xlane.f32.xlu0 %v1994
        %v2053 = vpop.xlane.xlu0 %2052
        %2054 = vmax.xlane.f32.xlu0 %v1997
        %v2055 = vpop.xlane.xlu0 %2054
        %2056 = vmax.xlane.f32.xlu0 %v2002
        %v2057 = vpop.xlane.xlu0 %2056
        %2058 = vmax.xlane.f32.xlu0 %v2005
        %v2059 = vpop.xlane.xlu0 %2058
        %2060 = vmax.xlane.f32.xlu0 %v2010
        %v2061 = vpop.xlane.xlu0 %2060
        %2062 = vmax.xlane.f32.xlu0 %v2013
        %v2063 = vpop.xlane.xlu0 %2062
        %2064 = vmax.xlane.f32.xlu0 %v2018
        %v2065 = vpop.xlane.xlu0 %2064
        %2066 = vmax.xlane.f32.xlu0 %v2021
        %v2067 = vpop.xlane.xlu0 %2066
        %2068 = vmax.xlane.f32.xlu0 %v2026
        %v2069 = vpop.xlane.xlu0 %2068
        %2070 = vmax.xlane.f32.xlu0 %v2029
        %v2071 = vpop.xlane.xlu0 %2070
        %2072 = vmax.xlane.f32.xlu0 %v2034
        %v2073 = vpop.xlane.xlu0 %2072
        %2074 = vmax.xlane.f32.xlu0 %v2037
        %v2075 = vpop.xlane.xlu0 %2074
        %2076 = vmax.xlane.f32.xlu0 %v2042
        %v2077 = vpop.xlane.xlu0 %2076
        %2078 = vmax.xlane.f32.xlu0 %v2045
        %v2079 = vpop.xlane.xlu0 %2078
        %v2080 = vsub.f32 %v1986, %v2049
        %v2081 = vsub.f32 %v1989, %v2051
        %v2082 = vsub.f32 %v1994, %v2053
        %v2083 = vsub.f32 %v1997, %v2055
        %v2084 = vsub.f32 %v2002, %v2057
        %v2085 = vsub.f32 %v2005, %v2059
        %v2086 = vsub.f32 %v2010, %v2061
        %v2087 = vsub.f32 %v2013, %v2063
        %v2088 = vsub.f32 %v2018, %v2065
        %v2089 = vsub.f32 %v2021, %v2067
        %v2090 = vsub.f32 %v2026, %v2069
        %v2091 = vsub.f32 %v2029, %v2071
        %v2092 = vsub.f32 %v2034, %v2073
        %v2093 = vsub.f32 %v2037, %v2075
        %v2094 = vsub.f32 %v2042, %v2077
        %v2095 = vsub.f32 %v2045, %v2079
        %v2096 = vmul.f32 %v2080, 1.442695
        %v2097 = vpow.pop %v2096
        %v2098 = vmul.f32 %v2081, 1.442695
        %v2099 = vpow.pop %v2098
        %v2100 = vmul.f32 %v2082, 1.442695
        %v2101 = vpow.pop %v2100
        %v2102 = vmul.f32 %v2083, 1.442695
        %v2103 = vpow.pop %v2102
        %v2104 = vmul.f32 %v2084, 1.442695
        %v2105 = vpow.pop %v2104
        %v2106 = vmul.f32 %v2085, 1.442695
        %v2107 = vpow.pop %v2106
        %v2108 = vmul.f32 %v2086, 1.442695
        %v2109 = vpow.pop %v2108
        %v2110 = vmul.f32 %v2087, 1.442695
        %v2111 = vpow.pop %v2110
        %v2112 = vmul.f32 %v2088, 1.442695
        %v2113 = vpow.pop %v2112
        %v2114 = vmul.f32 %v2089, 1.442695
        %v2115 = vpow.pop %v2114
        %v2116 = vmul.f32 %v2090, 1.442695
        %v2117 = vpow.pop %v2116
        %v2118 = vmul.f32 %v2091, 1.442695
        %v2119 = vpow.pop %v2118
        %v2120 = vmul.f32 %v2092, 1.442695
        %v2121 = vpow.pop %v2120
        %v2122 = vmul.f32 %v2093, 1.442695
        %v2123 = vpow.pop %v2122
        %v2124 = vmul.f32 %v2094, 1.442695
        %v2125 = vpow.pop %v2124
        %v2126 = vmul.f32 %v2095, 1.442695
        %v2127 = vpow.pop %v2126
        %2128 = vadd.xlane.f32.xlu0 %v2097
        %v2129 = vpop.xlane.xlu0 %2128
        %2130 = vadd.xlane.f32.xlu0 %v2099
        %v2131 = vpop.xlane.xlu0 %2130
        %2132 = vadd.xlane.f32.xlu0 %v2101
        %v2133 = vpop.xlane.xlu0 %2132
        %2134 = vadd.xlane.f32.xlu0 %v2103
        %v2135 = vpop.xlane.xlu0 %2134
        %2136 = vadd.xlane.f32.xlu0 %v2105
        %v2137 = vpop.xlane.xlu0 %2136
        %2138 = vadd.xlane.f32.xlu0 %v2107
        %v2139 = vpop.xlane.xlu0 %2138
        %2140 = vadd.xlane.f32.xlu0 %v2109
        %v2141 = vpop.xlane.xlu0 %2140
        %2142 = vadd.xlane.f32.xlu0 %v2111
        %v2143 = vpop.xlane.xlu0 %2142
        %2144 = vadd.xlane.f32.xlu0 %v2113
        %v2145 = vpop.xlane.xlu0 %2144
        %2146 = vadd.xlane.f32.xlu0 %v2115
        %v2147 = vpop.xlane.xlu0 %2146
        %2148 = vadd.xlane.f32.xlu0 %v2117
        %v2149 = vpop.xlane.xlu0 %2148
        %2150 = vadd.xlane.f32.xlu0 %v2119
        %v2151 = vpop.xlane.xlu0 %2150
        %2152 = vadd.xlane.f32.xlu0 %v2121
        %v2153 = vpop.xlane.xlu0 %2152
        %2154 = vadd.xlane.f32.xlu0 %v2123
        %v2155 = vpop.xlane.xlu0 %2154
        %2156 = vadd.xlane.f32.xlu0 %v2125
        %v2157 = vpop.xlane.xlu0 %2156
        %2158 = vadd.xlane.f32.xlu0 %v2127
        %v2159 = vpop.xlane.xlu0 %2158
        %v2160 = vrcp.pop %v2129
        %v2161 = vrcp.pop %v2131
        %v2162 = vrcp.pop %v2133
        %v2163 = vrcp.pop %v2135
        %v2164 = vrcp.pop %v2137
        %v2165 = vrcp.pop %v2139
        %v2166 = vrcp.pop %v2141
        %v2167 = vrcp.pop %v2143
        %v2168 = vrcp.pop %v2145
        %v2169 = vrcp.pop %v2147
        %v2170 = vrcp.pop %v2149
        %v2171 = vrcp.pop %v2151
        %v2172 = vrcp.pop %v2153
        %v2173 = vrcp.pop %v2155
        %v2174 = vrcp.pop %v2157
        %v2175 = vrcp.pop %v2159
        %v2176 = vmul.f32 %v2097, %v2160
        %v2177 = vmul.f32 %v2099, %v2161
        %v2178 = vmul.f32 %v2101, %v2162
        %v2179 = vmul.f32 %v2103, %v2163
        %v2180 = vmul.f32 %v2105, %v2164
        %v2181 = vmul.f32 %v2107, %v2165
        %v2182 = vmul.f32 %v2109, %v2166
        %v2183 = vmul.f32 %v2111, %v2167
        %v2184 = vmul.f32 %v2113, %v2168
        %v2185 = vmul.f32 %v2115, %v2169
        %v2186 = vmul.f32 %v2117, %v2170
        %v2187 = vmul.f32 %v2119, %v2171
        %v2188 = vmul.f32 %v2121, %v2172
        %v2189 = vmul.f32 %v2123, %v2173
        %v2190 = vmul.f32 %v2125, %v2174
        %v2191 = vmul.f32 %v2127, %v2175
        %v2192 = vpack.c.bf16 %v2177, %v2176
        %v2193 = vpack.c.bf16 %v2179, %v2178
        %v2194 = vpack.c.bf16 %v2181, %v2180
        %v2195 = vpack.c.bf16 %v2183, %v2182
        %v2196 = vpack.c.bf16 %v2185, %v2184
        %v2197 = vpack.c.bf16 %v2187, %v2186
        %v2198 = vpack.c.bf16 %v2189, %v2188
        %v2199 = vpack.c.bf16 %v2191, %v2190
        %2200 = vmatprep.subr.bf16.mxu0 0
        %2201 = vmatpush1.bf16.msra.mxu0 %v1582
        %2202 = vmatprep.subr.bf16.mxu0 0
        %2203 = vmatpush1.bf16.msra.mxu0 %v1580
        %2204 = vmatprep.subr.bf16.mxu0 0
        %2205 = vmatpush1.bf16.msra.mxu0 %v1578
        %2206 = vmatprep.subr.bf16.mxu0 0
        %2207 = vmatpush1.bf16.msra.mxu0 %v1576
        %2208 = vmatprep.subr.bf16.mxu0 0
        %2209 = vmatpush1.bf16.msra.mxu0 %v1574
        %2210 = vmatprep.subr.bf16.mxu0 0
        %2211 = vmatpush1.bf16.msra.mxu0 %v1572
        %2212 = vmatprep.subr.bf16.mxu0 0
        %2213 = vmatpush1.bf16.msra.mxu0 %v1570
        %2214 = vmatprep.subr.bf16.mxu0 0
        %2215 = vmatpush1.bf16.msra.mxu0 %v1568
        %2216 = vmatprep.subr.bf16.mxu0 0
        %2217 = vmatpush2.bf16.msra.mxu0 0
        %2218 = vmatprep.subr.bf16.mxu0 0
        %2219 = vmatpush2.bf16.msra.mxu0 0
        %2220 = vmatprep.subr.bf16.mxu0 0
        %2221 = vmatpush2.bf16.msra.mxu0 0
        %2222 = vmatprep.subr.bf16.mxu0 0
        %2223 = vmatpush2.bf16.msra.mxu0 0
        %2224 = vmatprep.subr.bf16.mxu0 0
        %2225 = vmatpush2.bf16.msra.mxu0 0
        %2226 = vmatprep.subr.bf16.mxu0 0
        %2227 = vmatpush2.bf16.msra.mxu0 0
        %2228 = vmatprep.subr.bf16.mxu0 0
        %2229 = vmatpush2.bf16.msra.mxu0 0
        %2230 = vmatprep.subr.bf16.mxu0 0
        %2231 = vmatpush2.bf16.msra.mxu0 0
        %2232 = vmatprep.mubr.bf16.mxu0 0
        %2233 = vmatmul.mubr.bf16.gmra.mxu0 %v2192
        %v2234 = vpop.f32.mrf.mxu0
        %v2235 = vadd.f32 0.0, %v2234
        %v2236 = vpop.f32.mrf.mxu0
        %v2237 = vpop.f32.mrf.mxu0
        %v2238 = vadd.f32 0.0, %v2237
        %v2239 = vpop.f32.mrf.mxu0
        %2240 = vmatprep.mubr.bf16.mxu0 0
        %2241 = vmatmul.mubr.bf16.gmra.mxu0 %v2193
        %v2242 = vpop.f32.mrf.mxu0
        %v2243 = vadd.f32 0.0, %v2242
        %v2244 = vpop.f32.mrf.mxu0
        %v2245 = vpop.f32.mrf.mxu0
        %v2246 = vadd.f32 0.0, %v2245
        %v2247 = vpop.f32.mrf.mxu0
        %2248 = vmatprep.mubr.bf16.mxu0 0
        %2249 = vmatmul.mubr.bf16.gmra.mxu0 %v2194
        %v2250 = vpop.f32.mrf.mxu0
        %v2251 = vadd.f32 0.0, %v2250
        %v2252 = vpop.f32.mrf.mxu0
        %v2253 = vpop.f32.mrf.mxu0
        %v2254 = vadd.f32 0.0, %v2253
        %v2255 = vpop.f32.mrf.mxu0
        %2256 = vmatprep.mubr.bf16.mxu0 0
        %2257 = vmatmul.mubr.bf16.gmra.mxu0 %v2195
        %v2258 = vpop.f32.mrf.mxu0
        %v2259 = vadd.f32 0.0, %v2258
        %v2260 = vpop.f32.mrf.mxu0
        %v2261 = vpop.f32.mrf.mxu0
        %v2262 = vadd.f32 0.0, %v2261
        %v2263 = vpop.f32.mrf.mxu0
        %2264 = vmatprep.mubr.bf16.mxu0 0
        %2265 = vmatmul.mubr.bf16.gmra.mxu0 %v2196
        %v2266 = vpop.f32.mrf.mxu0
        %v2267 = vadd.f32 0.0, %v2266
        %v2268 = vpop.f32.mrf.mxu0
        %v2269 = vpop.f32.mrf.mxu0
        %v2270 = vadd.f32 0.0, %v2269
        %v2271 = vpop.f32.mrf.mxu0
        %2272 = vmatprep.mubr.bf16.mxu0 0
        %2273 = vmatmul.mubr.bf16.gmra.mxu0 %v2197
        %v2274 = vpop.f32.mrf.mxu0
        %v2275 = vadd.f32 0.0, %v2274
        %v2276 = vpop.f32.mrf.mxu0
        %v2277 = vpop.f32.mrf.mxu0
        %v2278 = vadd.f32 0.0, %v2277
        %v2279 = vpop.f32.mrf.mxu0
        %2280 = vmatprep.mubr.bf16.mxu0 0
        %2281 = vmatmul.mubr.bf16.gmra.mxu0 %v2198
        %v2282 = vpop.f32.mrf.mxu0
        %v2283 = vadd.f32 0.0, %v2282
        %v2284 = vpop.f32.mrf.mxu0
        %v2285 = vpop.f32.mrf.mxu0
        %v2286 = vadd.f32 0.0, %v2285
        %v2287 = vpop.f32.mrf.mxu0
        %2288 = vmatprep.mubr.bf16.mxu0 0
        %2289 = vmatmul.mubr.bf16.gmra.mxu0 %v2199
        %v2290 = vpop.f32.mrf.mxu0
        %v2291 = vadd.f32 0.0, %v2290
        %v2292 = vpop.f32.mrf.mxu0
        %v2293 = vpop.f32.mrf.mxu0
        %v2294 = vadd.f32 0.0, %v2293
        %v2295 = vpop.f32.mrf.mxu0
        %2296 = vdwg.mxu0
        %2297 = vst [vmem:[%s388 + $0x8] sm:$0xff] %v2235
        %2298 = vst [vmem:[%s388 + $0x18] sm:$0xff] %v2238
        %2299 = vst [vmem:[%s388 + $0x28] sm:$0xff] %v2243
        %2300 = vst [vmem:[%s388 + $0x38] sm:$0xff] %v2246
        %2301 = vst [vmem:[%s388 + $0x48] sm:$0xff] %v2251
        %2302 = vst [vmem:[%s388 + $0x58] sm:$0xff] %v2254
        %2303 = vst [vmem:[%s388 + $0x68] sm:$0xff] %v2259
        %2304 = vst [vmem:[%s388 + $0x78] sm:$0xff] %v2262
        %2305 = vst [vmem:[%s388 + $0x88] sm:$0xff] %v2267
        %2306 = vst [vmem:[%s388 + $0x98] sm:$0xff] %v2270
        %2307 = vst [vmem:[%s388 + $0xa8] sm:$0xff] %v2275
        %2308 = vst [vmem:[%s388 + $0xb8] sm:$0xff] %v2278
        %2309 = vst [vmem:[%s388 + $0xc8] sm:$0xff] %v2283
        %2310 = vst [vmem:[%s388 + $0xd8] sm:$0xff] %v2286
        %2311 = vst [vmem:[%s388 + $0xe8] sm:$0xff] %v2291
        %2312 = vst [vmem:[%s388 + $0xf8] sm:$0xff] %v2294
        %s2313 = sand.u32 %s198, 1
        %s2314 = scalar_lea.sflag [#allocation4], %s2313
        %s2315 = sand.u32 %s198, 1
        %s2316 = smul.addr %s2315, 256
        %s2317 = scalar_lea.vmem [#allocation11], %s2316
        // Predicated region
        $region69: #{tpu_custom_call.1} parent=47 // pred_check
          %p2318 = pneg %p208
        $region70: #{tpu_custom_call.1} parent=47 // pred_check_branch
          %2320 = sbr.rel (%p2318) target = $region72
        $region71: #{tpu_custom_call.1} parent=47 // pred_region
          %s2322 = ssub.s32 4096, 4096
          %2323 = vsyncadd %s2314, %s2322
          %s2324 = smul.addr %s28, 32
          %s2325 = smul.addr %s2324, 128
          %s2326 = scalar_lea.hbm %s7, %s2325
          %s2327 = sshll.u32 %s2317, 4
          %s2328 = int_to_ptr.vmem [resolvable:$true] %s2327
          %2333 = dma.vmem_to_hbm [thread:$0]  %s2328, 4096, %s2326, %s2314, 256, 256, 16
        $region72: #{tpu_custom_call.1} parent=47 // pred_fallthru
          _
      $region48: #{tpu_custom_call.1} parent=5 // pred_fallthru
        _
      %p2334 = scmp.le.s32.totalorder 2, %s23
      // Predicated region
      $region73: #{tpu_custom_call.1} parent=5 // pred_check
        %p2335 = pneg %p2334
      $region74: #{tpu_custom_call.1} parent=5 // pred_check_branch
        %2337 = sbr.rel (%p2335) target = $region76
      $region75: #{tpu_custom_call.1} parent=5 // pred_region
        %s2338 = ssub.s32 %s23, 2
        // Predicated region
        $region77: #{tpu_custom_call.1} parent=75 // pred_check
          %p2339 = pneg %p214
        $region78: #{tpu_custom_call.1} parent=75 // pred_check_branch
          %2341 = sbr.rel (%p2339) target = $region80
        $region79: #{tpu_custom_call.1} parent=75 // pred_region
          %s2342 = sand.u32 %s199, 1
          %s2343 = scalar_lea.sflag [#allocation4], %s2342
          %s2344 = sand.u32 %s199, 1
          %s2345 = smul.addr %s2344, 256
          %s2346 = scalar_lea.vmem [#allocation11], %s2345
          %2347 = dma.done %s2343, 4096
        $region80: #{tpu_custom_call.1} parent=75 // pred_fallthru
          _
      $region76: #{tpu_custom_call.1} parent=5 // pred_fallthru
        _
    $region6: #{tpu_custom_call.1} parent=1 // loop_footer
      %s27 = sadd.s32 1, %s23
    $region7: #{tpu_custom_call.1} parent=1 // loop_footer_branch
      %22 = sbr.rel target = $region3
    $region8: #{tpu_custom_call.1} parent=1 // loop_exit
      _
    %2348 = vsyncpa [#allocation3], 1
    %s2349 = scalar_lea.sflag [#allocation3], 1
    %2350 = vsyncpa %s2349, 1
    %2351 = vsyncpa [#allocation6], 1
    %s2352 = scalar_lea.sflag [#allocation6], 1
    %2353 = vsyncpa %s2352, 1
    %2354 = vsyncpa [#allocation9], 1
    %2355 = vsyncpa [#allocation4], 1
    %s2356 = scalar_lea.sflag [#allocation4], 1
    %2357 = vsyncpa %s2356, 1

</llo_original>
